<compile_context>
chip_gen: v6e
topology: v6e:2x2x1
jax: 0.10.0
libtpu: 0.0.40
codegen_flags: <defaults>
</compile_context>

<pallas_src>
import numpy as np
import jax
import jax.numpy as jnp
from jax.experimental import pallas as pl
from jax.experimental.pallas import tpu as pltpu

CHUNK = 256          # fc1 output-column / fc2 contraction-row tile per grid step
FC1_IN = 2048
FC1_OUT = 1024


def aux_kernel(x_ref, pool_ref, w1t_ref, b1_ref,
               wf1q_ref, sc1_ref, bf1_ref,
               wf2q_ref, sc2_ref, bf2_ref,
               out_ref, flat_ref):
    # x_ref   : (N, 196, C)      f32   NHWC-flattened input        (resident, fetched once)
    # pool_ref: (16, 196)        f32   avg-pool gather matrix      (resident)
    # w1t_ref : (C, 128)         f32   1x1-conv weight, transposed (resident)
    # b1_ref  : (1, 128)         f32
    # wf1q_ref: (2048, CHUNK)    int8  fc1 weight column-chunk, rows re-indexed pos*128+ch
    # sc1_ref : (1, CHUNK)       f32   fc1 per-output-channel dequant scale chunk
    # bf1_ref : (1, CHUNK)       f32   fc1 bias chunk
    # wf2q_ref: (CHUNK, OUT_pad) int8  fc2 weight row-chunk
    # sc2_ref : (1, OUT_pad)     f32   fc2 per-output-channel dequant scale (resident)
    # bf2_ref : (1, OUT_pad)     f32   fc2 bias (resident)
    # out_ref : (N, OUT_pad)     f32   resident accumulator across the grid
    # flat_ref: (N, 2048)        f32   VMEM scratch: flattened conv activations (cross-step)
    step = pl.program_id(0)
    n_batch, hw, n_c = x_ref.shape

    # ---- step 0 only: AvgPool(5,3) + 1x1 conv + bias + ReLU + flatten (stays in VMEM) ----
    @pl.when(step == 0)
    def _():
        xr = x_ref[...]                                                   # (N, 196, C)
        pool_b = jnp.broadcast_to(pool_ref[...], (n_batch, 16, hw))
        pooled = jnp.einsum('nph,nhc->npc', pool_b, xr,
                            preferred_element_type=jnp.float32)           # (N, 16, C)
        conv = jnp.dot(pooled.reshape(n_batch * 16, n_c), w1t_ref[...],
                       preferred_element_type=jnp.float32)                # (N*16, 128)
        conv = jnp.maximum(conv + b1_ref[...], 0.0)
        conv3 = conv.reshape(n_batch, 16, 128)
        for p in range(16):                     # flatten: feature index = pos*128 + conv_ch
            flat_ref[:, p * 128:(p + 1) * 128] = conv3[:, p, :]
        out_ref[...] = jnp.zeros_like(out_ref)

    # ---- every step: fc1 column-chunk (int8 -> bf16 dequant) then fc2 partial product ----
    flat_bf16 = flat_ref[...].astype(jnp.bfloat16)                        # (N, 2048)
    w1c = wf1q_ref[...].astype(jnp.float32).astype(jnp.bfloat16)          # (2048, CHUNK)
    y1 = jnp.dot(flat_bf16, w1c, preferred_element_type=jnp.float32)      # (N, CHUNK)
    y1 = y1 * sc1_ref[...] + bf1_ref[...]                                 # f32 epilogue (VPU)

    # ---- Dropout2d(p=0.7): identity (inference mode) ----
    # TODO(synk): training-mode stochastic dropout intentionally not modeled.

    w2c = wf2q_ref[...].astype(jnp.float32).astype(jnp.bfloat16)          # (CHUNK, OUT_pad)
    out_ref[...] += jnp.dot(y1.astype(jnp.bfloat16), w2c,
                            preferred_element_type=jnp.float32)

    @pl.when(step == pl.num_programs(0) - 1)
    def _():
        out_ref[...] = out_ref[...] * sc2_ref[...] + bf2_ref[...]


def _quantize_cols_int8(w):
    """Symmetric int8 quantization with one scale per output column of w (K, J)."""
    amax = jnp.max(jnp.abs(w), axis=0, keepdims=True)
    scale = jnp.maximum(amax, 1e-12) / 127.0
    q = jnp.clip(jnp.round(w / scale), -127.0, 127.0).astype(jnp.int8)
    return q, scale.astype(jnp.float32)


def prepare_params(params):
    """One-time weight preprocessing (layout re-index, padding, int8 quantization).

    Call once per parameter set and cache the result; doing this per forward call would cost
    ~3x the kernel's own HBM traffic.
    """
    w1, b1 = params["conv1_w"], params["conv1_b"]
    wfc1, bfc1 = params["fc1_w"], params["fc1_b"]
    wfc2, bfc2 = params["fc2_w"], params["fc2_b"]
    out_features = int(wfc2.shape[0])
    out_pad = ((out_features + 127) // 128) * 128          # lane-dense fc2 / output columns

    # avg-pool gather matrix: P[pos, h*14+w] = 1/25 iff (h, w) lies in 5x5 window `pos`
    H = W = 14
    P = np.zeros((16, H * W), np.float32)
    for oi in range(4):
        for oj in range(4):
            for dh in range(5):
                for dw in range(5):
                    P[oi * 4 + oj, (3 * oi + dh) * W + (3 * oj + dw)] = 1.0 / 25.0

    # fc1 weight (1024, 2048), torch-flatten feature index = conv_ch*16 + pos
    #   -> re-index rows as pos*128 + conv_ch to match the kernel's lane-aligned flatten
    wf1 = (jnp.transpose(wfc1.reshape(FC1_OUT, 128, 16), (2, 1, 0))
           .reshape(FC1_IN, FC1_OUT))
    wf1_q, sc1 = _quantize_cols_int8(wf1)

    # fc2 weight (OUT, 1024) -> (1024, OUT_pad), zero-padded columns
    wf2 = jnp.pad(jnp.transpose(wfc2, (1, 0)), ((0, 0), (0, out_pad - out_features)))
    wf2_q, sc2 = _quantize_cols_int8(wf2)

    return {
        "pool":  jnp.asarray(P),
        "w1t":   jnp.transpose(w1, (1, 0)).astype(jnp.float32),          # (C, 128)
        "b1":    b1.reshape(1, 128).astype(jnp.float32),
        "wf1_q": wf1_q,                                                  # (2048, 1024) int8
        "sc1":   sc1,                                                    # (1, 1024)    f32
        "bf1":   bfc1.reshape(1, FC1_OUT).astype(jnp.float32),
        "wf2_q": wf2_q,                                                  # (1024, OUT_pad) int8
        "sc2":   sc2,                                                    # (1, OUT_pad) f32
        "bf2":   jnp.pad(bfc2, (0, out_pad - out_features))
                    .reshape(1, out_pad).astype(jnp.float32),
        "out_features": out_features,
    }


def _full_spec(shape):
    zeros = (0,) * len(shape)
    return pl.BlockSpec(shape, lambda i, _z=zeros: _z)


def auxiliary_forward(x, prep):
    """x: (N, C, 14, 14) NCHW float32, prep = prepare_params(...) -> (N, out_features) f32."""
    N, C, H, W = x.shape
    assert (H, W) == (14, 14), "fc1(in=2048) requires 14x14 input (pool -> 4x4, 128 ch)"
    out_pad = prep["wf2_q"].shape[1]
    out_features = prep["out_features"]
    nsteps = FC1_OUT // CHUNK

    # Per-call glue is layout plumbing on the (small) activation only.
    x_r = jnp.transpose(x, (0, 2, 3, 1)).reshape(N, H * W, C)

    bytes_accessed = (x_r.size * 4 + prep["pool"].size * 4 + prep["w1t"].size * 4
                      + prep["b1"].size * 4
                      + prep["wf1_q"].size + prep["sc1"].size * 4 + prep["bf1"].size * 4
                      + prep["wf2_q"].size + prep["sc2"].size * 4 + prep["bf2"].size * 4
                      + N * out_pad * 4)
    flops = 2 * N * (16 * H * W * C + 16 * C * 128 + FC1_IN * FC1_OUT + FC1_OUT * out_pad)
    cost = pl.CostEstimate(flops=flops, transcendentals=0, bytes_accessed=bytes_accessed)

    # TODO(synk): when run alongside the main tower, prefetch wf1_q / wf2_q with a cross-call
    # DMA future (semaphore + VMEM-ref outputs) so the weight stream hides behind tower compute.
    out = pl.pallas_call(
        aux_kernel,
        out_shape=jax.ShapeDtypeStruct((N, out_pad), jnp.float32),
        grid=(nsteps,),
        in_specs=[
            _full_spec(x_r.shape),
            _full_spec(prep["pool"].shape),
            _full_spec(prep["w1t"].shape),
            _full_spec(prep["b1"].shape),
            pl.BlockSpec((FC1_IN, CHUNK), lambda i: (0, i)),
            pl.BlockSpec((1, CHUNK), lambda i: (0, i)),
            pl.BlockSpec((1, CHUNK), lambda i: (0, i)),
            pl.BlockSpec((CHUNK, out_pad), lambda i: (i, 0)),
            _full_spec(prep["sc2"].shape),
            _full_spec(prep["bf2"].shape),
        ],
        out_specs=pl.BlockSpec((N, out_pad), lambda i: (0, 0)),
        scratch_shapes=[pltpu.VMEM((N, FC1_IN), jnp.float32)],
        compiler_params=pltpu.CompilerParams(
            dimension_semantics=("arbitrary",),      # sequential accumulation; do NOT split the
            vmem_limit_bytes=24 * 1024 * 1024),      # batch across v7x's two TensorCores
        cost_estimate=cost,
    )(x_r, prep["pool"], prep["w1t"], prep["b1"],
      prep["wf1_q"], prep["sc1"], prep["bf1"],
      prep["wf2_q"], prep["sc2"], prep["bf2"])
    return out[:, :out_features]


def init_params(key, in_feature, out_feature):
    """Deterministic synthetic parameters (PyTorch-like uniform fan-in init)."""
    ks = jax.random.split(key, 6)

    def u(k, shape, fan_in):
        bound = 1.0 / np.sqrt(fan_in)
        return jax.random.uniform(k, shape, jnp.float32, -bound, bound)

    return {
        "conv1_w": u(ks[0], (128, in_feature), in_feature),   # 1x1 conv kernel, squeezed
        "conv1_b": u(ks[1], (128,), in_feature),
        "fc1_w":   u(ks[2], (FC1_OUT, FC1_IN), FC1_IN),
        "fc1_b":   u(ks[3], (FC1_OUT,), FC1_IN),
        "fc2_w":   u(ks[4], (out_feature, FC1_OUT), FC1_OUT),
        "fc2_b":   u(ks[5], (out_feature,), FC1_OUT),
    }


def reference(x, params):
    """Pure-JAX f32 reference of the PyTorch forward (dropout = eval-mode identity).

    Note: like the spec module, there is no ReLU after fc1 (torchvision's InceptionAux differs).
    """
    pooled = jax.lax.reduce_window(x, 0.0, jax.lax.add,
                                   (1, 1, 5, 5), (1, 1, 3, 3), 'VALID') / 25.0
    conv = jnp.einsum('kc,nchw->nkhw', params["conv1_w"], pooled)
    conv = jnp.maximum(conv + params["conv1_b"][None, :, None, None], 0.0)
    flat = conv.reshape(x.shape[0], -1)
    y1 = flat @ params["fc1_w"].T + params["fc1_b"]
    return y1 @ params["fc2_w"].T + params["fc2_b"]


if __name__ == "__main__":
    key = jax.random.PRNGKey(0)
    k_x, k_p = jax.random.split(key)

    N, C_IN, OUT = 2, 16, 1000              # 14x14 spatial is required by fc1(in_features=2048)
    x = jax.random.normal(k_x, (N, C_IN, 14, 14), jnp.float32)
    params = init_params(k_p, C_IN, OUT)

    prep = prepare_params(params)           # one-time weight preprocessing (NOT per call)

    out = auxiliary_forward(x, prep)
    out = jax.block_until_ready(out)

    ref = reference(x, params)
    assert out.shape == (N, OUT)
    if not jnp.allclose(out, ref, atol=5e-2, rtol=5e-2):
        err = float(jnp.max(jnp.abs(out - ref)))
        raise AssertionError(f"Pallas kernel output mismatches JAX reference (max |err|={err})")

    print("KERNEL_OK")
</pallas_src>

<mosaic_0001>
module attributes {stable_mosaic.version = 11 : i64} {
  func.func @aux_kernel(%arg0: i32, %arg1: memref<2x196x16xf32, #tpu.memory_space<vmem>>, %arg2: memref<16x196xf32, #tpu.memory_space<vmem>>, %arg3: memref<16x128xf32, #tpu.memory_space<vmem>>, %arg4: memref<1x128xf32, #tpu.memory_space<vmem>>, %arg5: memref<2048x256xi8, #tpu.memory_space<vmem>>, %arg6: memref<1x256xf32, #tpu.memory_space<vmem>>, %arg7: memref<1x256xf32, #tpu.memory_space<vmem>>, %arg8: memref<256x1024xi8, #tpu.memory_space<vmem>>, %arg9: memref<1x1024xf32, #tpu.memory_space<vmem>>, %arg10: memref<1x1024xf32, #tpu.memory_space<vmem>>, %arg11: memref<2x1024xf32, #tpu.memory_space<vmem>>, %arg12: memref<2x2048xf32, #tpu.memory_space<vmem>>) attributes {dimension_semantics = [#tpu.dimension_semantics<arbitrary>], iteration_bounds = array<i64: 4>, scalar_prefetch = 0 : i64, scratch_operands = 1 : i64, tpu.core_type = #tpu.core_type<tc>, window_params = [{pipeline_mode = #tpu.pipeline_mode<synchronous>, transform_indices = @transform_0, window_bounds = array<i64: 2, 196, 16>}, {pipeline_mode = #tpu.pipeline_mode<synchronous>, transform_indices = @transform_1, window_bounds = array<i64: 16, 196>}, {pipeline_mode = #tpu.pipeline_mode<synchronous>, transform_indices = @transform_2, window_bounds = array<i64: 16, 128>}, {pipeline_mode = #tpu.pipeline_mode<synchronous>, transform_indices = @transform_3, window_bounds = array<i64: 1, 128>}, {transform_indices = @transform_4, window_bounds = array<i64: 2048, 256>}, {transform_indices = @transform_5, window_bounds = array<i64: 1, 256>}, {transform_indices = @transform_6, window_bounds = array<i64: 1, 256>}, {transform_indices = @transform_7, window_bounds = array<i64: 256, 1024>}, {pipeline_mode = #tpu.pipeline_mode<synchronous>, transform_indices = @transform_8, window_bounds = array<i64: 1, 1024>}, {pipeline_mode = #tpu.pipeline_mode<synchronous>, transform_indices = @transform_9, window_bounds = array<i64: 1, 1024>}, {pipeline_mode = #tpu.pipeline_mode<synchronous>, transform_indices = @transform_10, window_bounds = array<i64: 2, 1024>}]} {
    %c0_i32 = arith.constant 0 : i32
    %0 = arith.cmpi eq, %arg0, %c0_i32 : i32
    %1 = arith.extui %0 : i1 to i32
    %c0_i32_0 = arith.constant 0 : i32
    %2 = arith.cmpi ne, %1, %c0_i32_0 : i32
    scf.if %2 {
      %c0_16 = arith.constant 0 : index
      %c0_17 = arith.constant 0 : index
      %c0_18 = arith.constant 0 : index
      %26 = vector.load %arg1[%c0_16, %c0_17, %c0_18] : memref<2x196x16xf32, #tpu.memory_space<vmem>>, vector<2x196x16xf32>
      %c0_19 = arith.constant 0 : index
      %c0_20 = arith.constant 0 : index
      %27 = vector.load %arg2[%c0_19, %c0_20] : memref<16x196xf32, #tpu.memory_space<vmem>>, vector<16x196xf32>
      %28 = vector.shape_cast %27 : vector<16x196xf32> to vector<1x16x196xf32>
      %29 = vector.broadcast %28 : vector<1x16x196xf32> to vector<2x16x196xf32>
      "tpu.trace_start"() <{level = 10 : i32, message = "nph,nhc->npc"}> : () -> ()
      %cst_21 = arith.constant dense<0.000000e+00> : vector<2x16x16xf32>
      %30 = tpu.matmul %29, %26, %cst_21 {dimension_numbers = #tpu.dot_dimension_numbers<[2], [1], [1], [2], [0, 0, 0, 1, 1, 2], [0], [0]>} : vector<2x16x196xf32>, vector<2x196x16xf32>, vector<2x16x16xf32> -> vector<2x16x16xf32>
      "tpu.trace_stop"() : () -> ()
      %31 = vector.shape_cast %30 : vector<2x16x16xf32> to vector<32x16xf32>
      %c0_22 = arith.constant 0 : index
      %c0_23 = arith.constant 0 : index
      %32 = vector.load %arg3[%c0_22, %c0_23] : memref<16x128xf32, #tpu.memory_space<vmem>>, vector<16x128xf32>
      %cst_24 = arith.constant dense<0.000000e+00> : vector<32x128xf32>
      %33 = tpu.matmul %31, %32, %cst_24 {dimension_numbers = #tpu.dot_dimension_numbers<[1], [0], [0], [1], [0, 0, 1, 1], [], []>} : vector<32x16xf32>, vector<16x128xf32>, vector<32x128xf32> -> vector<32x128xf32>
      %c0_25 = arith.constant 0 : index
      %c0_26 = arith.constant 0 : index
      %34 = vector.load %arg4[%c0_25, %c0_26] : memref<1x128xf32, #tpu.memory_space<vmem>>, vector<1x128xf32>
      %35 = vector.broadcast %34 : vector<1x128xf32> to vector<32x128xf32>
      %36 = arith.addf %33, %35 : vector<32x128xf32>
      %cst_27 = arith.constant 0.000000e+00 : f32
      %37 = vector.broadcast %cst_27 : f32 to vector<32x128xf32>
      %38 = arith.maximumf %36, %37 : vector<32x128xf32>
      %39 = vector.shape_cast %38 : vector<32x128xf32> to vector<2x16x128xf32>
      %40 = vector.extract_strided_slice %39 {offsets = [0, 0, 0], sizes = [2, 1, 128], strides = [1, 1, 1]} : vector<2x16x128xf32> to vector<2x1x128xf32>
      %41 = vector.shape_cast %40 : vector<2x1x128xf32> to vector<2x128xf32>
      %c0_28 = arith.constant 0 : index
      %c0_29 = arith.constant 0 : index
      %42 = vector.load %arg12[%c0_28, %c0_29] : memref<2x2048xf32, #tpu.memory_space<vmem>>, vector<2x128xf32>
      tpu.vector_store %arg12[%c0_28, %c0_29], %41 {strides = array<i32>} : memref<2x2048xf32, #tpu.memory_space<vmem>>, vector<2x128xf32>,
      %43 = vector.extract_strided_slice %39 {offsets = [0, 1, 0], sizes = [2, 1, 128], strides = [1, 1, 1]} : vector<2x16x128xf32> to vector<2x1x128xf32>
      %44 = vector.shape_cast %43 : vector<2x1x128xf32> to vector<2x128xf32>
      %c0_30 = arith.constant 0 : index
      %c128 = arith.constant 128 : index
      %45 = vector.load %arg12[%c0_30, %c128] : memref<2x2048xf32, #tpu.memory_space<vmem>>, vector<2x128xf32>
      tpu.vector_store %arg12[%c0_30, %c128], %44 {strides = array<i32>} : memref<2x2048xf32, #tpu.memory_space<vmem>>, vector<2x128xf32>,
      %46 = vector.extract_strided_slice %39 {offsets = [0, 2, 0], sizes = [2, 1, 128], strides = [1, 1, 1]} : vector<2x16x128xf32> to vector<2x1x128xf32>
      %47 = vector.shape_cast %46 : vector<2x1x128xf32> to vector<2x128xf32>
      %c0_31 = arith.constant 0 : index
      %c256 = arith.constant 256 : index
      %48 = vector.load %arg12[%c0_31, %c256] : memref<2x2048xf32, #tpu.memory_space<vmem>>, vector<2x128xf32>
      tpu.vector_store %arg12[%c0_31, %c256], %47 {strides = array<i32>} : memref<2x2048xf32, #tpu.memory_space<vmem>>, vector<2x128xf32>,
      %49 = vector.extract_strided_slice %39 {offsets = [0, 3, 0], sizes = [2, 1, 128], strides = [1, 1, 1]} : vector<2x16x128xf32> to vector<2x1x128xf32>
      %50 = vector.shape_cast %49 : vector<2x1x128xf32> to vector<2x128xf32>
      %c0_32 = arith.constant 0 : index
      %c384 = arith.constant 384 : index
      %51 = vector.load %arg12[%c0_32, %c384] : memref<2x2048xf32, #tpu.memory_space<vmem>>, vector<2x128xf32>
      tpu.vector_store %arg12[%c0_32, %c384], %50 {strides = array<i32>} : memref<2x2048xf32, #tpu.memory_space<vmem>>, vector<2x128xf32>,
      %52 = vector.extract_strided_slice %39 {offsets = [0, 4, 0], sizes = [2, 1, 128], strides = [1, 1, 1]} : vector<2x16x128xf32> to vector<2x1x128xf32>
      %53 = vector.shape_cast %52 : vector<2x1x128xf32> to vector<2x128xf32>
      %c0_33 = arith.constant 0 : index
      %c512 = arith.constant 512 : index
      %54 = vector.load %arg12[%c0_33, %c512] : memref<2x2048xf32, #tpu.memory_space<vmem>>, vector<2x128xf32>
      tpu.vector_store %arg12[%c0_33, %c512], %53 {strides = array<i32>} : memref<2x2048xf32, #tpu.memory_space<vmem>>, vector<2x128xf32>,
      %55 = vector.extract_strided_slice %39 {offsets = [0, 5, 0], sizes = [2, 1, 128], strides = [1, 1, 1]} : vector<2x16x128xf32> to vector<2x1x128xf32>
      %56 = vector.shape_cast %55 : vector<2x1x128xf32> to vector<2x128xf32>
      %c0_34 = arith.constant 0 : index
      %c640 = arith.constant 640 : index
      %57 = vector.load %arg12[%c0_34, %c640] : memref<2x2048xf32, #tpu.memory_space<vmem>>, vector<2x128xf32>
      tpu.vector_store %arg12[%c0_34, %c640], %56 {strides = array<i32>} : memref<2x2048xf32, #tpu.memory_space<vmem>>, vector<2x128xf32>,
      %58 = vector.extract_strided_slice %39 {offsets = [0, 6, 0], sizes = [2, 1, 128], strides = [1, 1, 1]} : vector<2x16x128xf32> to vector<2x1x128xf32>
      %59 = vector.shape_cast %58 : vector<2x1x128xf32> to vector<2x128xf32>
      %c0_35 = arith.constant 0 : index
      %c768 = arith.constant 768 : index
      %60 = vector.load %arg12[%c0_35, %c768] : memref<2x2048xf32, #tpu.memory_space<vmem>>, vector<2x128xf32>
      tpu.vector_store %arg12[%c0_35, %c768], %59 {strides = array<i32>} : memref<2x2048xf32, #tpu.memory_space<vmem>>, vector<2x128xf32>,
      %61 = vector.extract_strided_slice %39 {offsets = [0, 7, 0], sizes = [2, 1, 128], strides = [1, 1, 1]} : vector<2x16x128xf32> to vector<2x1x128xf32>
      %62 = vector.shape_cast %61 : vector<2x1x128xf32> to vector<2x128xf32>
      %c0_36 = arith.constant 0 : index
      %c896 = arith.constant 896 : index
      %63 = vector.load %arg12[%c0_36, %c896] : memref<2x2048xf32, #tpu.memory_space<vmem>>, vector<2x128xf32>
      tpu.vector_store %arg12[%c0_36, %c896], %62 {strides = array<i32>} : memref<2x2048xf32, #tpu.memory_space<vmem>>, vector<2x128xf32>,
      %64 = vector.extract_strided_slice %39 {offsets = [0, 8, 0], sizes = [2, 1, 128], strides = [1, 1, 1]} : vector<2x16x128xf32> to vector<2x1x128xf32>
      %65 = vector.shape_cast %64 : vector<2x1x128xf32> to vector<2x128xf32>
      %c0_37 = arith.constant 0 : index
      %c1024 = arith.constant 1024 : index
      %66 = vector.load %arg12[%c0_37, %c1024] : memref<2x2048xf32, #tpu.memory_space<vmem>>, vector<2x128xf32>
      tpu.vector_store %arg12[%c0_37, %c1024], %65 {strides = array<i32>} : memref<2x2048xf32, #tpu.memory_space<vmem>>, vector<2x128xf32>,
      %67 = vector.extract_strided_slice %39 {offsets = [0, 9, 0], sizes = [2, 1, 128], strides = [1, 1, 1]} : vector<2x16x128xf32> to vector<2x1x128xf32>
      %68 = vector.shape_cast %67 : vector<2x1x128xf32> to vector<2x128xf32>
      %c0_38 = arith.constant 0 : index
      %c1152 = arith.constant 1152 : index
      %69 = vector.load %arg12[%c0_38, %c1152] : memref<2x2048xf32, #tpu.memory_space<vmem>>, vector<2x128xf32>
      tpu.vector_store %arg12[%c0_38, %c1152], %68 {strides = array<i32>} : memref<2x2048xf32, #tpu.memory_space<vmem>>, vector<2x128xf32>,
      %70 = vector.extract_strided_slice %39 {offsets = [0, 10, 0], sizes = [2, 1, 128], strides = [1, 1, 1]} : vector<2x16x128xf32> to vector<2x1x128xf32>
      %71 = vector.shape_cast %70 : vector<2x1x128xf32> to vector<2x128xf32>
      %c0_39 = arith.constant 0 : index
      %c1280 = arith.constant 1280 : index
      %72 = vector.load %arg12[%c0_39, %c1280] : memref<2x2048xf32, #tpu.memory_space<vmem>>, vector<2x128xf32>
      tpu.vector_store %arg12[%c0_39, %c1280], %71 {strides = array<i32>} : memref<2x2048xf32, #tpu.memory_space<vmem>>, vector<2x128xf32>,
      %73 = vector.extract_strided_slice %39 {offsets = [0, 11, 0], sizes = [2, 1, 128], strides = [1, 1, 1]} : vector<2x16x128xf32> to vector<2x1x128xf32>
      %74 = vector.shape_cast %73 : vector<2x1x128xf32> to vector<2x128xf32>
      %c0_40 = arith.constant 0 : index
      %c1408 = arith.constant 1408 : index
      %75 = vector.load %arg12[%c0_40, %c1408] : memref<2x2048xf32, #tpu.memory_space<vmem>>, vector<2x128xf32>
      tpu.vector_store %arg12[%c0_40, %c1408], %74 {strides = array<i32>} : memref<2x2048xf32, #tpu.memory_space<vmem>>, vector<2x128xf32>,
      %76 = vector.extract_strided_slice %39 {offsets = [0, 12, 0], sizes = [2, 1, 128], strides = [1, 1, 1]} : vector<2x16x128xf32> to vector<2x1x128xf32>
      %77 = vector.shape_cast %76 : vector<2x1x128xf32> to vector<2x128xf32>
      %c0_41 = arith.constant 0 : index
      %c1536 = arith.constant 1536 : index
      %78 = vector.load %arg12[%c0_41, %c1536] : memref<2x2048xf32, #tpu.memory_space<vmem>>, vector<2x128xf32>
      tpu.vector_store %arg12[%c0_41, %c1536], %77 {strides = array<i32>} : memref<2x2048xf32, #tpu.memory_space<vmem>>, vector<2x128xf32>,
      %79 = vector.extract_strided_slice %39 {offsets = [0, 13, 0], sizes = [2, 1, 128], strides = [1, 1, 1]} : vector<2x16x128xf32> to vector<2x1x128xf32>
      %80 = vector.shape_cast %79 : vector<2x1x128xf32> to vector<2x128xf32>
      %c0_42 = arith.constant 0 : index
      %c1664 = arith.constant 1664 : index
      %81 = vector.load %arg12[%c0_42, %c1664] : memref<2x2048xf32, #tpu.memory_space<vmem>>, vector<2x128xf32>
      tpu.vector_store %arg12[%c0_42, %c1664], %80 {strides = array<i32>} : memref<2x2048xf32, #tpu.memory_space<vmem>>, vector<2x128xf32>,
      %82 = vector.extract_strided_slice %39 {offsets = [0, 14, 0], sizes = [2, 1, 128], strides = [1, 1, 1]} : vector<2x16x128xf32> to vector<2x1x128xf32>
      %83 = vector.shape_cast %82 : vector<2x1x128xf32> to vector<2x128xf32>
      %c0_43 = arith.constant 0 : index
      %c1792 = arith.constant 1792 : index
      %84 = vector.load %arg12[%c0_43, %c1792] : memref<2x2048xf32, #tpu.memory_space<vmem>>, vector<2x128xf32>
      tpu.vector_store %arg12[%c0_43, %c1792], %83 {strides = array<i32>} : memref<2x2048xf32, #tpu.memory_space<vmem>>, vector<2x128xf32>,
      %85 = vector.extract_strided_slice %39 {offsets = [0, 15, 0], sizes = [2, 1, 128], strides = [1, 1, 1]} : vector<2x16x128xf32> to vector<2x1x128xf32>
      %86 = vector.shape_cast %85 : vector<2x1x128xf32> to vector<2x128xf32>
      %c0_44 = arith.constant 0 : index
      %c1920 = arith.constant 1920 : index
      %87 = vector.load %arg12[%c0_44, %c1920] : memref<2x2048xf32, #tpu.memory_space<vmem>>, vector<2x128xf32>
      tpu.vector_store %arg12[%c0_44, %c1920], %86 {strides = array<i32>} : memref<2x2048xf32, #tpu.memory_space<vmem>>, vector<2x128xf32>,
      %cst_45 = arith.constant 0.000000e+00 : f32
      %88 = vector.broadcast %cst_45 : f32 to vector<2x1024xf32>
      %c0_46 = arith.constant 0 : index
      %c0_47 = arith.constant 0 : index
      %89 = vector.load %arg11[%c0_46, %c0_47] : memref<2x1024xf32, #tpu.memory_space<vmem>>, vector<2x1024xf32>
      tpu.vector_store %arg11[%c0_46, %c0_47], %88 {strides = array<i32>} : memref<2x1024xf32, #tpu.memory_space<vmem>>, vector<2x1024xf32>,
    } else {
    }
    %c0 = arith.constant 0 : index
    %c0_1 = arith.constant 0 : index
    %3 = vector.load %arg12[%c0, %c0_1] : memref<2x2048xf32, #tpu.memory_space<vmem>>, vector<2x2048xf32>
    %4 = arith.truncf %3 : vector<2x2048xf32> to vector<2x2048xbf16>
    %c0_2 = arith.constant 0 : index
    %c0_3 = arith.constant 0 : index
    %5 = vector.load %arg5[%c0_2, %c0_3] : memref<2048x256xi8, #tpu.memory_space<vmem>>, vector<2048x256xi8>
    %6 = arith.sitofp %5 : vector<2048x256xi8> to vector<2048x256xf32>
    %7 = arith.truncf %6 : vector<2048x256xf32> to vector<2048x256xbf16>
    %cst = arith.constant dense<0.000000e+00> : vector<2x256xf32>
    %8 = tpu.matmul %4, %7, %cst {dimension_numbers = #tpu.dot_dimension_numbers<[1], [0], [0], [1], [0, 0, 1, 1], [], []>} : vector<2x2048xbf16>, vector<2048x256xbf16>, vector<2x256xf32> -> vector<2x256xf32>
    %c0_4 = arith.constant 0 : index
    %c0_5 = arith.constant 0 : index
    %9 = vector.load %arg6[%c0_4, %c0_5] : memref<1x256xf32, #tpu.memory_space<vmem>>, vector<1x256xf32>
    %10 = vector.broadcast %9 : vector<1x256xf32> to vector<2x256xf32>
    %11 = arith.mulf %8, %10 : vector<2x256xf32>
    %c0_6 = arith.constant 0 : index
    %c0_7 = arith.constant 0 : index
    %12 = vector.load %arg7[%c0_6, %c0_7] : memref<1x256xf32, #tpu.memory_space<vmem>>, vector<1x256xf32>
    %13 = vector.broadcast %12 : vector<1x256xf32> to vector<2x256xf32>
    %14 = arith.addf %11, %13 : vector<2x256xf32>
    %c0_8 = arith.constant 0 : index
    %c0_9 = arith.constant 0 : index
    %15 = vector.load %arg8[%c0_8, %c0_9] : memref<256x1024xi8, #tpu.memory_space<vmem>>, vector<256x1024xi8>
    %16 = arith.sitofp %15 : vector<256x1024xi8> to vector<256x1024xf32>
    %17 = arith.truncf %16 : vector<256x1024xf32> to vector<256x1024xbf16>
    %c0_10 = arith.constant 0 : index
    %c0_11 = arith.constant 0 : index
    %18 = vector.load %arg11[%c0_10, %c0_11] : memref<2x1024xf32, #tpu.memory_space<vmem>>, vector<2x1024xf32>
    %19 = arith.truncf %14 : vector<2x256xf32> to vector<2x256xbf16>
    %cst_12 = arith.constant dense<0.000000e+00> : vector<2x1024xf32>
    %20 = tpu.matmul %19, %17, %cst_12 {dimension_numbers = #tpu.dot_dimension_numbers<[1], [0], [0], [1], [0, 0, 1, 1], [], []>} : vector<2x256xbf16>, vector<256x1024xbf16>, vector<2x1024xf32> -> vector<2x1024xf32>
    %21 = arith.addf %18, %20 : vector<2x1024xf32>
    %c0_13 = arith.constant 0 : index
    %c0_14 = arith.constant 0 : index
    %22 = vector.load %arg11[%c0_13, %c0_14] : memref<2x1024xf32, #tpu.memory_space<vmem>>, vector<2x1024xf32>
    tpu.vector_store %arg11[%c0_13, %c0_14], %21 {strides = array<i32>} : memref<2x1024xf32, #tpu.memory_space<vmem>>, vector<2x1024xf32>,
    %c3_i32 = arith.constant 3 : i32
    %23 = arith.cmpi eq, %arg0, %c3_i32 : i32
    %24 = arith.extui %23 : i1 to i32
    %c0_i32_15 = arith.constant 0 : i32
    %25 = arith.cmpi ne, %24, %c0_i32_15 : i32
    scf.if %25 {
      %c0_16 = arith.constant 0 : index
      %c0_17 = arith.constant 0 : index
      %26 = vector.load %arg11[%c0_16, %c0_17] : memref<2x1024xf32, #tpu.memory_space<vmem>>, vector<2x1024xf32>
      %c0_18 = arith.constant 0 : index
      %c0_19 = arith.constant 0 : index
      %27 = vector.load %arg9[%c0_18, %c0_19] : memref<1x1024xf32, #tpu.memory_space<vmem>>, vector<1x1024xf32>
      %28 = vector.broadcast %27 : vector<1x1024xf32> to vector<2x1024xf32>
      %29 = arith.mulf %26, %28 : vector<2x1024xf32>
      %c0_20 = arith.constant 0 : index
      %c0_21 = arith.constant 0 : index
      %30 = vector.load %arg10[%c0_20, %c0_21] : memref<1x1024xf32, #tpu.memory_space<vmem>>, vector<1x1024xf32>
      %31 = vector.broadcast %30 : vector<1x1024xf32> to vector<2x1024xf32>
      %32 = arith.addf %29, %31 : vector<2x1024xf32>
      %c0_22 = arith.constant 0 : index
      %c0_23 = arith.constant 0 : index
      %33 = vector.load %arg11[%c0_22, %c0_23] : memref<2x1024xf32, #tpu.memory_space<vmem>>, vector<2x1024xf32>
      tpu.vector_store %arg11[%c0_22, %c0_23], %32 {strides = array<i32>} : memref<2x1024xf32, #tpu.memory_space<vmem>>, vector<2x1024xf32>,
    } else {
    }
    return
  }
  func.func @transform_0(%arg0: i32) -> (i32, i32, i32) {
    %c0_i32 = arith.constant 0 : i32
    %c0_i32_0 = arith.constant 0 : i32
    %c0_i32_1 = arith.constant 0 : i32
    %c0_i32_2 = arith.constant 0 : i32
    return %c0_i32, %c0_i32_0, %c0_i32_1 : i32, i32, i32
  }
  func.func @transform_1(%arg0: i32) -> (i32, i32) {
    %c0_i32 = arith.constant 0 : i32
    %c0_i32_0 = arith.constant 0 : i32
    %c0_i32_1 = arith.constant 0 : i32
    return %c0_i32, %c0_i32_0 : i32, i32
  }
  func.func @transform_2(%arg0: i32) -> (i32, i32) {
    %c0_i32 = arith.constant 0 : i32
    %c0_i32_0 = arith.constant 0 : i32
    %c0_i32_1 = arith.constant 0 : i32
    return %c0_i32, %c0_i32_0 : i32, i32
  }
  func.func @transform_3(%arg0: i32) -> (i32, i32) {
    %c0_i32 = arith.constant 0 : i32
    %c0_i32_0 = arith.constant 0 : i32
    %c0_i32_1 = arith.constant 0 : i32
    return %c0_i32, %c0_i32_0 : i32, i32
  }
  func.func @transform_4(%arg0: i32) -> (i32, i32) {
    %c0_i32 = arith.constant 0 : i32
    %c0_i32_0 = arith.constant 0 : i32
    return %c0_i32, %arg0 : i32, i32
  }
  func.func @transform_5(%arg0: i32) -> (i32, i32) {
    %c0_i32 = arith.constant 0 : i32
    %c0_i32_0 = arith.constant 0 : i32
    return %c0_i32, %arg0 : i32, i32
  }
  func.func @transform_6(%arg0: i32) -> (i32, i32) {
    %c0_i32 = arith.constant 0 : i32
    %c0_i32_0 = arith.constant 0 : i32
    return %c0_i32, %arg0 : i32, i32
  }
  func.func @transform_7(%arg0: i32) -> (i32, i32) {
    %c0_i32 = arith.constant 0 : i32
    %c0_i32_0 = arith.constant 0 : i32
    return %arg0, %c0_i32 : i32, i32
  }
  func.func @transform_8(%arg0: i32) -> (i32, i32) {
    %c0_i32 = arith.constant 0 : i32
    %c0_i32_0 = arith.constant 0 : i32
    %c0_i32_1 = arith.constant 0 : i32
    return %c0_i32, %c0_i32_0 : i32, i32
  }
  func.func @transform_9(%arg0: i32) -> (i32, i32) {
    %c0_i32 = arith.constant 0 : i32
    %c0_i32_0 = arith.constant 0 : i32
    %c0_i32_1 = arith.constant 0 : i32
    return %c0_i32, %c0_i32_0 : i32, i32
  }
  func.func @transform_10(%arg0: i32) -> (i32, i32) {
    %c0_i32 = arith.constant 0 : i32
    %c0_i32_0 = arith.constant 0 : i32
    %c0_i32_1 = arith.constant 0 : i32
    return %c0_i32, %c0_i32_0 : i32, i32
  }
}

</mosaic_0001>

<llo_original>
// kernel: tpu_custom_call.1
$region0: #{tpu_custom_call.1}
  #allocation0 [shape = 'u32[]', space=smem, size = 0x4, offset = 0x4, fixed_abs, tag = 'smem constant byte address 0x4 - core index']
  #allocation1 [shape = 'u32[144,128]{1,0:T(1,128)}', space=vmem, size = 0x12000, scoped, tag = 'internal scratch']
  #allocation2 [shape = 'f32[2,2048]{1,0:T(2,128)}', space=vmem, size = 0x4000, scoped, tag = 'scratch operand']
  %s0 = inlined_call_operand.vmem [shape: f32[2,196,16], index: 0, kind: input, shape index: {}]
  %s1 = inlined_call_operand.hbm [shape: f32[16,196], index: 1, kind: input, shape index: {}]
  %s2 = inlined_call_operand.hbm [shape: f32[16,128], index: 2, kind: input, shape index: {}]
  %s3 = inlined_call_operand.hbm [shape: f32[1,128], index: 3, kind: input, shape index: {}]
  %s4 = inlined_call_operand.hbm [shape: s8[2048,1024], index: 4, kind: input, shape index: {}]
  %s5 = inlined_call_operand.hbm [shape: f32[1,1024], index: 5, kind: input, shape index: {}]
  %s6 = inlined_call_operand.hbm [shape: f32[1,1024], index: 6, kind: input, shape index: {}]
  %s7 = inlined_call_operand.hbm [shape: s8[1024,1024], index: 7, kind: input, shape index: {}]
  %s8 = inlined_call_operand.hbm [shape: f32[1,1024], index: 8, kind: input, shape index: {}]
  %s9 = inlined_call_operand.hbm [shape: f32[1,1024], index: 9, kind: input, shape index: {}]
  %s10 = inlined_call_operand.hbm [shape: f32[2,1024], index: 10, kind: output, shape index: {}]
  %s11 = sld [smem:[#allocation0]]
  $region117: #{tpu_custom_call.1} parent=0
    _
  %s13 = ssub.s32 1, %s11
  %s14 = scalar_select 0, %s13, %s11
  $region1: #{tpu_custom_call.1} parent=0
    #allocation3 [shape = 'u8[16384]{0}', space=vmem, size = 0x4000, scoped, tag = 'input window, operand 1, single buffered']
    #allocation4 [shape = 's32[2]{0}', space=sflag, size = 0x8, scoped, tag = 'scoped memory for tpu_custom_call.1']
    #allocation5 [shape = 's32[2]{0}', space=sflag, size = 0x8, scoped, tag = 'scoped memory for tpu_custom_call.1']
    #allocation6 [shape = 'u8[8192]{0}', space=vmem, size = 0x2000, scoped, tag = 'input window, operand 2, single buffered']
    #allocation7 [shape = 's32[1]{0}', space=sflag, size = 0x4, scoped, tag = 'scoped memory for tpu_custom_call.1']
    #allocation8 [shape = 'u8[512]{0}', space=vmem, size = 0x400, scoped, tag = 'input window, operand 3, single buffered']
    #allocation9 [shape = 'u8[1048576]{0}', space=vmem, size = 0x100000, scoped, tag = 'input window, operand 4']
    #allocation10 [shape = 's32[2]{0}', space=sflag, size = 0x8, scoped, tag = 'scoped memory for tpu_custom_call.1']
    #allocation11 [shape = 'u8[2048]{0}', space=vmem, size = 0x800, scoped, tag = 'input window, operand 5']
    #allocation12 [shape = 'u8[2048]{0}', space=vmem, size = 0x800, scoped, tag = 'input window, operand 6']
    #allocation13 [shape = 's32[2]{0}', space=sflag, size = 0x8, scoped, tag = 'scoped memory for tpu_custom_call.1']
    #allocation14 [shape = 'u8[524288]{0}', space=vmem, size = 0x80000, scoped, tag = 'input window, operand 7']
    #allocation15 [shape = 'u8[4096]{0}', space=vmem, size = 0x1000, scoped, tag = 'input window, operand 8, single buffered']
    #allocation16 [shape = 's32[1]{0}', space=sflag, size = 0x4, scoped, tag = 'scoped memory for tpu_custom_call.1']
    #allocation17 [shape = 'u8[4096]{0}', space=vmem, size = 0x1000, scoped, tag = 'input window, operand 9, single buffered']
    #allocation18 [shape = 'u8[8192]{0}', space=vmem, size = 0x2000, scoped, tag = 'output window, operand 0, single buffered']
    %15 = vsyncpa [#allocation4], 0
    %16 = vsyncpa [#allocation7], 0
    %17 = vsyncpa [#allocation10], 0
    %s18 = scalar_lea.sflag [#allocation10], 1
    %19 = vsyncpa %s18, 0
    %20 = vsyncpa [#allocation13], 0
    %s21 = scalar_lea.sflag [#allocation13], 1
    %22 = vsyncpa %s21, 0
    %23 = vsyncpa [#allocation16], 0
    %24 = vsyncpa [#allocation5], 0
    loop: start=0, step=1, limit=6
    $region2: #{tpu_custom_call.1} parent=1 // loop_pre_header
      _
    $region3: #{tpu_custom_call.1} parent=1 // loop_header
      %s26 = sphi 0, %s30
      %p27 = scmp.ge.s32.totalorder %s26, 6
      %s34 = sphi 0, %s34
      %s36 = sphi 0, %s34
      %s37 = sphi 0, %s36
      %s51 = sphi 0, %s37
      %s55 = sphi 0, %s55
      %s57 = sphi 0, %s55
      %s58 = sphi 0, %s57
      %s72 = sphi 0, %s58
      %s76 = sphi 0, %s76
      %s78 = sphi 0, %s76
      %s79 = sphi 0, %s78
      %s93 = sphi 0, %s79
      %s97 = sphi 0, %s97
      %s99 = sphi 0, %s97
      %s100 = sphi 0, %s99
      %s114 = sphi 0, %s100
      %s120 = sphi 0, %s122
      %s123 = sphi 0, %s120
      %s124 = sphi 0, %s123
      %s140 = sphi 0, %s124
      %s146 = sphi 0, %s148
      %s149 = sphi 0, %s146
      %s150 = sphi 0, %s149
      %s166 = sphi 0, %s150
      %s172 = sphi 0, %s174
      %s175 = sphi 0, %s172
      %s176 = sphi 0, %s175
      %s192 = sphi 0, %s176
      %s198 = sphi 0, %s200
      %s201 = sphi 0, %s198
      %s202 = sphi 0, %s201
      %s218 = sphi 0, %s202
      %s222 = sphi 0, %s222
      %s224 = sphi 0, %s222
      %s225 = sphi 0, %s224
      %s239 = sphi 0, %s225
      %s243 = sphi 0, %s243
      %s245 = sphi 0, %s243
      %s246 = sphi 0, %s245
      %s260 = sphi 0, %s246
      %s264 = sphi 0, %s264
      %s266 = sphi 0, %s264
      %s267 = sphi 0, %s266
      %s281 = sphi 0, %s267
    $region4: #{tpu_custom_call.1} parent=1 // loop_header_branch
      %29 = sbr.rel (%p27) target = $region8
    $region5: #{tpu_custom_call.1} parent=1 // loop_body
      %s31 = ssub.s32 %s26, 1
      %s32 = ssub.s32 %s26, 2
      %s33 = sadd.s32 %s26, 1
      %s35 = sadd.s32 %s34, 1
      %p38 = scmp.eq.s32.totalorder %s26, 3
      %p39 = scmp.ne.s32.totalorder %s34, %s36
      %p40 = scmp.eq.s32.totalorder %s26, 0
      %p41 = por %p39, %p40
      %p42 = scmp.ne.s32.totalorder %s34, %s36
      %p43 = scmp.eq.s32.totalorder %s31, 3
      %p44 = por %p42, %p43
      %p45 = scmp.ne.s32.totalorder %s36, %s37
      %p46 = scmp.eq.s32.totalorder %s31, 0
      %p47 = por %p45, %p46
      %p48 = scmp.ne.s32.totalorder %s36, %s37
      %p49 = scmp.eq.s32.totalorder %s32, 3
      %p50 = por %p48, %p49
      %p52 = scmp.ne.s32.totalorder %s37, %s51
      %p53 = scmp.eq.s32.totalorder %s32, 0
      %p54 = por %p52, %p53
      %s56 = sadd.s32 %s55, 1
      %p59 = scmp.eq.s32.totalorder %s26, 3
      %p60 = scmp.ne.s32.totalorder %s55, %s57
      %p61 = scmp.eq.s32.totalorder %s26, 0
      %p62 = por %p60, %p61
      %p63 = scmp.ne.s32.totalorder %s55, %s57
      %p64 = scmp.eq.s32.totalorder %s31, 3
      %p65 = por %p63, %p64
      %p66 = scmp.ne.s32.totalorder %s57, %s58
      %p67 = scmp.eq.s32.totalorder %s31, 0
      %p68 = por %p66, %p67
      %p69 = scmp.ne.s32.totalorder %s57, %s58
      %p70 = scmp.eq.s32.totalorder %s32, 3
      %p71 = por %p69, %p70
      %p73 = scmp.ne.s32.totalorder %s58, %s72
      %p74 = scmp.eq.s32.totalorder %s32, 0
      %p75 = por %p73, %p74
      %s77 = sadd.s32 %s76, 1
      %p80 = scmp.eq.s32.totalorder %s26, 3
      %p81 = scmp.ne.s32.totalorder %s76, %s78
      %p82 = scmp.eq.s32.totalorder %s26, 0
      %p83 = por %p81, %p82
      %p84 = scmp.ne.s32.totalorder %s76, %s78
      %p85 = scmp.eq.s32.totalorder %s31, 3
      %p86 = por %p84, %p85
      %p87 = scmp.ne.s32.totalorder %s78, %s79
      %p88 = scmp.eq.s32.totalorder %s31, 0
      %p89 = por %p87, %p88
      %p90 = scmp.ne.s32.totalorder %s78, %s79
      %p91 = scmp.eq.s32.totalorder %s32, 3
      %p92 = por %p90, %p91
      %p94 = scmp.ne.s32.totalorder %s79, %s93
      %p95 = scmp.eq.s32.totalorder %s32, 0
      %p96 = por %p94, %p95
      %s98 = sadd.s32 %s97, 1
      %p101 = scmp.eq.s32.totalorder %s26, 3
      %p102 = scmp.ne.s32.totalorder %s97, %s99
      %p103 = scmp.eq.s32.totalorder %s26, 0
      %p104 = por %p102, %p103
      %p105 = scmp.ne.s32.totalorder %s97, %s99
      %p106 = scmp.eq.s32.totalorder %s31, 3
      %p107 = por %p105, %p106
      %p108 = scmp.ne.s32.totalorder %s99, %s100
      %p109 = scmp.eq.s32.totalorder %s31, 0
      %p110 = por %p108, %p109
      %p111 = scmp.ne.s32.totalorder %s99, %s100
      %p112 = scmp.eq.s32.totalorder %s32, 3
      %p113 = por %p111, %p112
      %p115 = scmp.ne.s32.totalorder %s100, %s114
      %p116 = scmp.eq.s32.totalorder %s32, 0
      %p117 = por %p115, %p116
      %s118 = ssub.s32 %s26, %s33
      %p119 = scmp.eq.s32.totalorder %s118, 0
      %s121 = sadd.s32 %s120, 1
      %s122 = scalar_select %p119, %s120, %s121
      %p125 = pneg %p119
      %p126 = scmp.eq.s32.totalorder %s26, 3
      %p127 = por %p125, %p126
      %p128 = scmp.ne.s32.totalorder %s120, %s123
      %p129 = scmp.eq.s32.totalorder %s26, 0
      %p130 = por %p128, %p129
      %p131 = scmp.ne.s32.totalorder %s120, %s123
      %p132 = scmp.eq.s32.totalorder %s31, 3
      %p133 = por %p131, %p132
      %p134 = scmp.ne.s32.totalorder %s123, %s124
      %p135 = scmp.eq.s32.totalorder %s31, 0
      %p136 = por %p134, %p135
      %p137 = scmp.ne.s32.totalorder %s123, %s124
      %p138 = scmp.eq.s32.totalorder %s32, 3
      %p139 = por %p137, %p138
      %p141 = scmp.ne.s32.totalorder %s124, %s140
      %p142 = scmp.eq.s32.totalorder %s32, 0
      %p143 = por %p141, %p142
      %s144 = ssub.s32 %s26, %s33
      %p145 = scmp.eq.s32.totalorder %s144, 0
      %s147 = sadd.s32 %s146, 1
      %s148 = scalar_select %p145, %s146, %s147
      %p151 = pneg %p145
      %p152 = scmp.eq.s32.totalorder %s26, 3
      %p153 = por %p151, %p152
      %p154 = scmp.ne.s32.totalorder %s146, %s149
      %p155 = scmp.eq.s32.totalorder %s26, 0
      %p156 = por %p154, %p155
      %p157 = scmp.ne.s32.totalorder %s146, %s149
      %p158 = scmp.eq.s32.totalorder %s31, 3
      %p159 = por %p157, %p158
      %p160 = scmp.ne.s32.totalorder %s149, %s150
      %p161 = scmp.eq.s32.totalorder %s31, 0
      %p162 = por %p160, %p161
      %p163 = scmp.ne.s32.totalorder %s149, %s150
      %p164 = scmp.eq.s32.totalorder %s32, 3
      %p165 = por %p163, %p164
      %p167 = scmp.ne.s32.totalorder %s150, %s166
      %p168 = scmp.eq.s32.totalorder %s32, 0
      %p169 = por %p167, %p168
      %s170 = ssub.s32 %s26, %s33
      %p171 = scmp.eq.s32.totalorder %s170, 0
      %s173 = sadd.s32 %s172, 1
      %s174 = scalar_select %p171, %s172, %s173
      %p177 = pneg %p171
      %p178 = scmp.eq.s32.totalorder %s26, 3
      %p179 = por %p177, %p178
      %p180 = scmp.ne.s32.totalorder %s172, %s175
      %p181 = scmp.eq.s32.totalorder %s26, 0
      %p182 = por %p180, %p181
      %p183 = scmp.ne.s32.totalorder %s172, %s175
      %p184 = scmp.eq.s32.totalorder %s31, 3
      %p185 = por %p183, %p184
      %p186 = scmp.ne.s32.totalorder %s175, %s176
      %p187 = scmp.eq.s32.totalorder %s31, 0
      %p188 = por %p186, %p187
      %p189 = scmp.ne.s32.totalorder %s175, %s176
      %p190 = scmp.eq.s32.totalorder %s32, 3
      %p191 = por %p189, %p190
      %p193 = scmp.ne.s32.totalorder %s176, %s192
      %p194 = scmp.eq.s32.totalorder %s32, 0
      %p195 = por %p193, %p194
      %s196 = ssub.s32 %s26, %s33
      %p197 = scmp.eq.s32.totalorder %s196, 0
      %s199 = sadd.s32 %s198, 1
      %s200 = scalar_select %p197, %s198, %s199
      %p203 = pneg %p197
      %p204 = scmp.eq.s32.totalorder %s26, 3
      %p205 = por %p203, %p204
      %p206 = scmp.ne.s32.totalorder %s198, %s201
      %p207 = scmp.eq.s32.totalorder %s26, 0
      %p208 = por %p206, %p207
      %p209 = scmp.ne.s32.totalorder %s198, %s201
      %p210 = scmp.eq.s32.totalorder %s31, 3
      %p211 = por %p209, %p210
      %p212 = scmp.ne.s32.totalorder %s201, %s202
      %p213 = scmp.eq.s32.totalorder %s31, 0
      %p214 = por %p212, %p213
      %p215 = scmp.ne.s32.totalorder %s201, %s202
      %p216 = scmp.eq.s32.totalorder %s32, 3
      %p217 = por %p215, %p216
      %p219 = scmp.ne.s32.totalorder %s202, %s218
      %p220 = scmp.eq.s32.totalorder %s32, 0
      %p221 = por %p219, %p220
      %s223 = sadd.s32 %s222, 1
      %p226 = scmp.eq.s32.totalorder %s26, 3
      %p227 = scmp.ne.s32.totalorder %s222, %s224
      %p228 = scmp.eq.s32.totalorder %s26, 0
      %p229 = por %p227, %p228
      %p230 = scmp.ne.s32.totalorder %s222, %s224
      %p231 = scmp.eq.s32.totalorder %s31, 3
      %p232 = por %p230, %p231
      %p233 = scmp.ne.s32.totalorder %s224, %s225
      %p234 = scmp.eq.s32.totalorder %s31, 0
      %p235 = por %p233, %p234
      %p236 = scmp.ne.s32.totalorder %s224, %s225
      %p237 = scmp.eq.s32.totalorder %s32, 3
      %p238 = por %p236, %p237
      %p240 = scmp.ne.s32.totalorder %s225, %s239
      %p241 = scmp.eq.s32.totalorder %s32, 0
      %p242 = por %p240, %p241
      %s244 = sadd.s32 %s243, 1
      %p247 = scmp.eq.s32.totalorder %s26, 3
      %p248 = scmp.ne.s32.totalorder %s243, %s245
      %p249 = scmp.eq.s32.totalorder %s26, 0
      %p250 = por %p248, %p249
      %p251 = scmp.ne.s32.totalorder %s243, %s245
      %p252 = scmp.eq.s32.totalorder %s31, 3
      %p253 = por %p251, %p252
      %p254 = scmp.ne.s32.totalorder %s245, %s246
      %p255 = scmp.eq.s32.totalorder %s31, 0
      %p256 = por %p254, %p255
      %p257 = scmp.ne.s32.totalorder %s245, %s246
      %p258 = scmp.eq.s32.totalorder %s32, 3
      %p259 = por %p257, %p258
      %p261 = scmp.ne.s32.totalorder %s246, %s260
      %p262 = scmp.eq.s32.totalorder %s32, 0
      %p263 = por %p261, %p262
      %s265 = sadd.s32 %s264, 1
      %p268 = scmp.eq.s32.totalorder %s26, 3
      %p269 = scmp.ne.s32.totalorder %s264, %s266
      %p270 = scmp.eq.s32.totalorder %s26, 0
      %p271 = por %p269, %p270
      %p272 = scmp.ne.s32.totalorder %s264, %s266
      %p273 = scmp.eq.s32.totalorder %s31, 3
      %p274 = por %p272, %p273
      %p275 = scmp.ne.s32.totalorder %s266, %s267
      %p276 = scmp.eq.s32.totalorder %s31, 0
      %p277 = por %p275, %p276
      %p278 = scmp.ne.s32.totalorder %s266, %s267
      %p279 = scmp.eq.s32.totalorder %s32, 3
      %p280 = por %p278, %p279
      %p282 = scmp.ne.s32.totalorder %s267, %s281
      %p283 = scmp.eq.s32.totalorder %s32, 0
      %p284 = por %p282, %p283
      %p285 = scmp.le.s32.totalorder 1, %s26
      %p286 = scmp.lt.s32.totalorder %s26, 5
      %p287 = pnand %p285, %p286
      %p288 = pneg %p287
      // Predicated region
      $region9: #{tpu_custom_call.1} parent=5 // pred_check
        _
      $region10: #{tpu_custom_call.1} parent=5 // pred_check_branch
        %290 = sbr.rel (%p287) target = $region12
      $region11: #{tpu_custom_call.1} parent=5 // pred_region
        %s291 = ssub.s32 %s26, 1
        // Predicated region
        $region13: #{tpu_custom_call.1} parent=11 // pred_check
          %p292 = pneg %p47
        $region14: #{tpu_custom_call.1} parent=11 // pred_check_branch
          %294 = sbr.rel (%p292) target = $region16
        $region15: #{tpu_custom_call.1} parent=11 // pred_region
          _
        $region16: #{tpu_custom_call.1} parent=11 // pred_fallthru
          _
        // Predicated region
        $region17: #{tpu_custom_call.1} parent=11 // pred_check
          %p295 = pneg %p68
        $region18: #{tpu_custom_call.1} parent=11 // pred_check_branch
          %297 = sbr.rel (%p295) target = $region20
        $region19: #{tpu_custom_call.1} parent=11 // pred_region
          %s299 = ssub.s32 512, 512
          %300 = vsyncadd [#allocation4], %s299
          %s301 = sshll.u32 [#allocation3], 4
          %s302 = int_to_ptr.vmem [resolvable:$true] %s301
          %307 = dma.hbm_to_vmem [thread:$0]  %s1, 512, %s302, [#allocation4], 256, 256, 16
        $region20: #{tpu_custom_call.1} parent=11 // pred_fallthru
          _
        // Predicated region
        $region21: #{tpu_custom_call.1} parent=11 // pred_check
          %p308 = pneg %p89
        $region22: #{tpu_custom_call.1} parent=11 // pred_check_branch
          %310 = sbr.rel (%p308) target = $region24
        $region23: #{tpu_custom_call.1} parent=11 // pred_region
          %s312 = ssub.s32 256, 256
          %313 = vsyncadd [#allocation7], %s312
          %s314 = sshll.u32 [#allocation6], 4
          %s315 = int_to_ptr.vmem [resolvable:$true] %s314
          %320 = dma.hbm_to_vmem [thread:$0]  %s2, 256, %s315, [#allocation7], 128, 128, 8
        $region24: #{tpu_custom_call.1} parent=11 // pred_fallthru
          _
        // Predicated region
        $region25: #{tpu_custom_call.1} parent=11 // pred_check
          %p321 = pneg %p110
        $region26: #{tpu_custom_call.1} parent=11 // pred_check_branch
          %323 = sbr.rel (%p321) target = $region28
        $region27: #{tpu_custom_call.1} parent=11 // pred_region
          %s325 = ssub.s32 16, 16
          %326 = vsyncadd [#allocation7], %s325
          %s328 = sshll.u32 [#allocation8], 4
          %s329 = int_to_ptr.vmem [resolvable:$true] %s328
          %331 = dma.hbm_to_vmem [thread:$0]  %s3, 16, %s329, [#allocation7]
        $region28: #{tpu_custom_call.1} parent=11 // pred_fallthru
          _
        // Predicated region
        $region29: #{tpu_custom_call.1} parent=11 // pred_check
          %p332 = pneg %p235
        $region30: #{tpu_custom_call.1} parent=11 // pred_check_branch
          %334 = sbr.rel (%p332) target = $region32
        $region31: #{tpu_custom_call.1} parent=11 // pred_region
          %s336 = ssub.s32 128, 128
          %337 = vsyncadd [#allocation16], %s336
          %s339 = sshll.u32 [#allocation15], 4
          %s340 = int_to_ptr.vmem [resolvable:$true] %s339
          %342 = dma.hbm_to_vmem [thread:$0]  %s8, 128, %s340, [#allocation16]
        $region32: #{tpu_custom_call.1} parent=11 // pred_fallthru
          _
        // Predicated region
        $region33: #{tpu_custom_call.1} parent=11 // pred_check
          %p343 = pneg %p256
        $region34: #{tpu_custom_call.1} parent=11 // pred_check_branch
          %345 = sbr.rel (%p343) target = $region36
        $region35: #{tpu_custom_call.1} parent=11 // pred_region
          %s347 = ssub.s32 128, 128
          %348 = vsyncadd [#allocation16], %s347
          %s350 = sshll.u32 [#allocation17], 4
          %s351 = int_to_ptr.vmem [resolvable:$true] %s350
          %353 = dma.hbm_to_vmem [thread:$0]  %s9, 128, %s351, [#allocation16]
        $region36: #{tpu_custom_call.1} parent=11 // pred_fallthru
          _
      $region12: #{tpu_custom_call.1} parent=5 // pred_fallthru
        _
      %p354 = scmp.lt.s32.totalorder %s26, 4
      // Predicated region
      $region37: #{tpu_custom_call.1} parent=5 // pred_check
        %p355 = pneg %p354
      $region38: #{tpu_custom_call.1} parent=5 // pred_check_branch
        %357 = sbr.rel (%p355) target = $region40
      $region39: #{tpu_custom_call.1} parent=5 // pred_region
        // Predicated region
        $region41: #{tpu_custom_call.1} parent=39 // pred_check
          %p358 = pneg %p130
        $region42: #{tpu_custom_call.1} parent=39 // pred_check_branch
          %360 = sbr.rel (%p358) target = $region44
        $region43: #{tpu_custom_call.1} parent=39 // pred_region
          %s361 = sand.u32 %s26, 1
          %s362 = scalar_lea.sflag [#allocation10], %s361
          %s363 = sand.u32 %s120, 1
          %s364 = smul.addr %s363, 1024
          %s365 = scalar_lea.vmem [#allocation9], %s364
          %s366 = smul.u32 2, %s26
          %s368 = ssub.s32 16384, 16384
          %369 = vsyncadd %s362, %s368
          %s370 = smul.addr %s366, 128
          %s371 = scalar_lea.hbm %s4, %s370
          %s372 = sshll.u32 %s365, 4
          %s373 = int_to_ptr.vmem [resolvable:$true] %s372
          %378 = dma.hbm_to_vmem [thread:$0]  %s371, 16384, %s373, %s362, 1024, 256, 16
        $region44: #{tpu_custom_call.1} parent=39 // pred_fallthru
          _
        // Predicated region
        $region45: #{tpu_custom_call.1} parent=39 // pred_check
          %p379 = pneg %p156
        $region46: #{tpu_custom_call.1} parent=39 // pred_check_branch
          %381 = sbr.rel (%p379) target = $region48
        $region47: #{tpu_custom_call.1} parent=39 // pred_region
          %s382 = sand.u32 %s26, 1
          %s383 = scalar_lea.sflag [#allocation10], %s382
          %s384 = sand.u32 %s146, 1
          %s385 = smul.addr %s384, 2
          %s386 = scalar_lea.vmem [#allocation11], %s385
          %s387 = smul.u32 2, %s26
          %s389 = ssub.s32 32, 32
          %390 = vsyncadd %s383, %s389
          %s391 = smul.addr %s387, 16
          %s392 = scalar_lea.hbm %s5, %s391
          %s394 = sshll.u32 %s386, 4
          %s395 = int_to_ptr.vmem [resolvable:$true] %s394
          %397 = dma.hbm_to_vmem [thread:$0]  %s392, 32, %s395, %s383
        $region48: #{tpu_custom_call.1} parent=39 // pred_fallthru
          _
        // Predicated region
        $region49: #{tpu_custom_call.1} parent=39 // pred_check
          %p398 = pneg %p182
        $region50: #{tpu_custom_call.1} parent=39 // pred_check_branch
          %400 = sbr.rel (%p398) target = $region52
        $region51: #{tpu_custom_call.1} parent=39 // pred_region
          %s401 = sand.u32 %s26, 1
          %s402 = scalar_lea.sflag [#allocation13], %s401
          %s403 = sand.u32 %s172, 1
          %s404 = smul.addr %s403, 2
          %s405 = scalar_lea.vmem [#allocation12], %s404
          %s406 = smul.u32 2, %s26
          %s408 = ssub.s32 32, 32
          %409 = vsyncadd %s402, %s408
          %s410 = smul.addr %s406, 16
          %s411 = scalar_lea.hbm %s6, %s410
          %s413 = sshll.u32 %s405, 4
          %s414 = int_to_ptr.vmem [resolvable:$true] %s413
          %416 = dma.hbm_to_vmem [thread:$0]  %s411, 32, %s414, %s402
        $region52: #{tpu_custom_call.1} parent=39 // pred_fallthru
          _
        // Predicated region
        $region53: #{tpu_custom_call.1} parent=39 // pred_check
          %p417 = pneg %p208
        $region54: #{tpu_custom_call.1} parent=39 // pred_check_branch
          %419 = sbr.rel (%p417) target = $region56
        $region55: #{tpu_custom_call.1} parent=39 // pred_region
          %s420 = sand.u32 %s26, 1
          %s421 = scalar_lea.sflag [#allocation13], %s420
          %s422 = sand.u32 %s198, 1
          %s423 = smul.addr %s422, 512
          %s424 = scalar_lea.vmem [#allocation14], %s423
          %s425 = smul.u32 8, %s26
          %s427 = ssub.s32 8192, 8192
          %428 = vsyncadd %s421, %s427
          %s429 = smul.addr %s425, 8
          %s430 = smul.addr %s429, 128
          %s431 = scalar_lea.hbm %s7, %s430
          %s432 = sshll.u32 %s424, 4
          %s433 = int_to_ptr.vmem [resolvable:$true] %s432
          %438 = dma.hbm_to_vmem [thread:$0]  %s431, 8192, %s433, %s421, 1024, 1024, 64
        $region56: #{tpu_custom_call.1} parent=39 // pred_fallthru
          _
      $region40: #{tpu_custom_call.1} parent=5 // pred_fallthru
        _
      %p439 = scmp.le.s32.totalorder 1, %s26
      %p440 = scmp.lt.s32.totalorder %s26, 5
      %p441 = pnand %p439, %p440
      %p442 = pneg %p441
      // Predicated region
      $region57: #{tpu_custom_call.1} parent=5 // pred_check
        _
      $region58: #{tpu_custom_call.1} parent=5 // pred_check_branch
        %444 = sbr.rel (%p441) target = $region60
      $region59: #{tpu_custom_call.1} parent=5 // pred_region
        %s445 = ssub.s32 %s26, 1
        // Predicated region
        $region61: #{tpu_custom_call.1} parent=59 // pred_check
          %p446 = pneg %p68
        $region62: #{tpu_custom_call.1} parent=59 // pred_check_branch
          %448 = sbr.rel (%p446) target = $region64
        $region63: #{tpu_custom_call.1} parent=59 // pred_region
          %449 = dma.done [#allocation4], 512
        $region64: #{tpu_custom_call.1} parent=59 // pred_fallthru
          _
        // Predicated region
        $region65: #{tpu_custom_call.1} parent=59 // pred_check
          %p450 = pneg %p89
        $region66: #{tpu_custom_call.1} parent=59 // pred_check_branch
          %452 = sbr.rel (%p450) target = $region68
        $region67: #{tpu_custom_call.1} parent=59 // pred_region
          %453 = dma.done [#allocation7], 256
        $region68: #{tpu_custom_call.1} parent=59 // pred_fallthru
          _
        // Predicated region
        $region69: #{tpu_custom_call.1} parent=59 // pred_check
          %p454 = pneg %p110
        $region70: #{tpu_custom_call.1} parent=59 // pred_check_branch
          %456 = sbr.rel (%p454) target = $region72
        $region71: #{tpu_custom_call.1} parent=59 // pred_region
          %457 = dma.done [#allocation7], 16
        $region72: #{tpu_custom_call.1} parent=59 // pred_fallthru
          _
        %s458 = sand.u32 %s31, 1
        %s459 = scalar_lea.sflag [#allocation10], %s458
        %s460 = sand.u32 %s123, 1
        %s461 = smul.addr %s460, 1024
        %s462 = scalar_lea.vmem [#allocation9], %s461
        // Predicated region
        $region73: #{tpu_custom_call.1} parent=59 // pred_check
          %p463 = pneg %p136
        $region74: #{tpu_custom_call.1} parent=59 // pred_check_branch
          %465 = sbr.rel (%p463) target = $region76
        $region75: #{tpu_custom_call.1} parent=59 // pred_region
          %466 = dma.done %s459, 16384
        $region76: #{tpu_custom_call.1} parent=59 // pred_fallthru
          _
        %s467 = sand.u32 %s31, 1
        %s468 = scalar_lea.sflag [#allocation10], %s467
        %s469 = sand.u32 %s149, 1
        %s470 = smul.addr %s469, 2
        %s471 = scalar_lea.vmem [#allocation11], %s470
        // Predicated region
        $region77: #{tpu_custom_call.1} parent=59 // pred_check
          %p472 = pneg %p162
        $region78: #{tpu_custom_call.1} parent=59 // pred_check_branch
          %474 = sbr.rel (%p472) target = $region80
        $region79: #{tpu_custom_call.1} parent=59 // pred_region
          %475 = dma.done %s468, 32
        $region80: #{tpu_custom_call.1} parent=59 // pred_fallthru
          _
        %s476 = sand.u32 %s31, 1
        %s477 = scalar_lea.sflag [#allocation13], %s476
        %s478 = sand.u32 %s175, 1
        %s479 = smul.addr %s478, 2
        %s480 = scalar_lea.vmem [#allocation12], %s479
        // Predicated region
        $region81: #{tpu_custom_call.1} parent=59 // pred_check
          %p481 = pneg %p188
        $region82: #{tpu_custom_call.1} parent=59 // pred_check_branch
          %483 = sbr.rel (%p481) target = $region84
        $region83: #{tpu_custom_call.1} parent=59 // pred_region
          %484 = dma.done %s477, 32
        $region84: #{tpu_custom_call.1} parent=59 // pred_fallthru
          _
        %s485 = sand.u32 %s31, 1
        %s486 = scalar_lea.sflag [#allocation13], %s485
        %s487 = sand.u32 %s201, 1
        %s488 = smul.addr %s487, 512
        %s489 = scalar_lea.vmem [#allocation14], %s488
        // Predicated region
        $region85: #{tpu_custom_call.1} parent=59 // pred_check
          %p490 = pneg %p214
        $region86: #{tpu_custom_call.1} parent=59 // pred_check_branch
          %492 = sbr.rel (%p490) target = $region88
        $region87: #{tpu_custom_call.1} parent=59 // pred_region
          %493 = dma.done %s486, 8192
        $region88: #{tpu_custom_call.1} parent=59 // pred_fallthru
          _
        // Predicated region
        $region89: #{tpu_custom_call.1} parent=59 // pred_check
          %p494 = pneg %p235
        $region90: #{tpu_custom_call.1} parent=59 // pred_check_branch
          %496 = sbr.rel (%p494) target = $region92
        $region91: #{tpu_custom_call.1} parent=59 // pred_region
          %497 = dma.done [#allocation16], 128
        $region92: #{tpu_custom_call.1} parent=59 // pred_fallthru
          _
        // Predicated region
        $region93: #{tpu_custom_call.1} parent=59 // pred_check
          %p498 = pneg %p256
        $region94: #{tpu_custom_call.1} parent=59 // pred_check_branch
          %500 = sbr.rel (%p498) target = $region96
        $region95: #{tpu_custom_call.1} parent=59 // pred_region
          %501 = dma.done [#allocation16], 128
        $region96: #{tpu_custom_call.1} parent=59 // pred_fallthru
          _
        %p502 = pneg %p47
        %p503 = pneg %p44
        %p504 = pneg %p68
        %p505 = pneg %p65
        %p506 = pneg %p89
        %p507 = pneg %p86
        %p508 = pneg %p110
        %p509 = pneg %p107
        %s510 = sand.u32 %s31, 1
        %s511 = scalar_lea.sflag [#allocation10], %s510
        %s512 = sand.u32 %s123, 1
        %s513 = smul.addr %s512, 1024
        %s514 = scalar_lea.vmem [#allocation9], %s513
        %p515 = pneg %p136
        %p516 = pneg %p133
        %s517 = sand.u32 %s31, 1
        %s518 = scalar_lea.sflag [#allocation10], %s517
        %s519 = sand.u32 %s149, 1
        %s520 = smul.addr %s519, 2
        %s521 = scalar_lea.vmem [#allocation11], %s520
        %p522 = pneg %p162
        %p523 = pneg %p159
        %s524 = sand.u32 %s31, 1
        %s525 = scalar_lea.sflag [#allocation13], %s524
        %s526 = sand.u32 %s175, 1
        %s527 = smul.addr %s526, 2
        %s528 = scalar_lea.vmem [#allocation12], %s527
        %p529 = pneg %p188
        %p530 = pneg %p185
        %s531 = sand.u32 %s31, 1
        %s532 = scalar_lea.sflag [#allocation13], %s531
        %s533 = sand.u32 %s201, 1
        %s534 = smul.addr %s533, 512
        %s535 = scalar_lea.vmem [#allocation14], %s534
        %p536 = pneg %p214
        %p537 = pneg %p211
        %p538 = pneg %p235
        %p539 = pneg %p232
        %p540 = pneg %p256
        %p541 = pneg %p253
        %p542 = pneg %p277
        %p543 = pneg %p274
        %s544 = smul.u32 2, %s31
        %s545 = smul.u32 2, %s31
        %s546 = smul.u32 2, %s31
        %s547 = smul.u32 8, %s31
        %p548 = scmp.eq.s32.totalorder %s31, 0
        // Predicated region
        $region97: #{tpu_custom_call.1} parent=59 // pred_check
          %p549 = pneg %p548
        $region98: #{tpu_custom_call.1} parent=59 // pred_check_branch
          %551 = sbr.rel (%p549) target = $region100
        $region99: #{tpu_custom_call.1} parent=59 // pred_region
          %v552 = vld [vmem:[%s0] sm:$0xff]
          %v553 = vld [vmem:[%s0 + $0x8] sm:$0xff]
          %v554 = vld [vmem:[%s0 + $0x10] sm:$0xff]
          %v555 = vld [vmem:[%s0 + $0x18] sm:$0xff]
          %v556 = vld [vmem:[%s0 + $0x20] sm:$0xff]
          %v557 = vld [vmem:[%s0 + $0x28] sm:$0xff]
          %v558 = vld [vmem:[%s0 + $0x30] sm:$0xff]
          %v559 = vld [vmem:[%s0 + $0x38] sm:$0xff]
          %v560 = vld [vmem:[%s0 + $0x40] sm:$0xff]
          %v561 = vld [vmem:[%s0 + $0x48] sm:$0xff]
          %v562 = vld [vmem:[%s0 + $0x50] sm:$0xff]
          %v563 = vld [vmem:[%s0 + $0x58] sm:$0xff]
          %v564 = vld [vmem:[%s0 + $0x60] sm:$0xff]
          %v565 = vld [vmem:[%s0 + $0x68] sm:$0xff]
          %v566 = vld [vmem:[%s0 + $0x70] sm:$0xff]
          %v567 = vld [vmem:[%s0 + $0x78] sm:$0xff]
          %v568 = vld [vmem:[%s0 + $0x80] sm:$0xff]
          %v569 = vld [vmem:[%s0 + $0x88] sm:$0xff]
          %v570 = vld [vmem:[%s0 + $0x90] sm:$0xff]
          %v571 = vld [vmem:[%s0 + $0x98] sm:$0xff]
          %v572 = vld [vmem:[%s0 + $0xa0] sm:$0xff]
          %v573 = vld [vmem:[%s0 + $0xa8] sm:$0xff]
          %v574 = vld [vmem:[%s0 + $0xb0] sm:$0xff]
          %v575 = vld [vmem:[%s0 + $0xb8] sm:$0xff]
          %v576 = vld [vmem:[%s0 + $0xc0] sm:$0xf]
          %v577 = vld [vmem:[%s0 + $0xc8] sm:$0xff]
          %v578 = vld [vmem:[%s0 + $0xd0] sm:$0xff]
          %v579 = vld [vmem:[%s0 + $0xd8] sm:$0xff]
          %v580 = vld [vmem:[%s0 + $0xe0] sm:$0xff]
          %v581 = vld [vmem:[%s0 + $0xe8] sm:$0xff]
          %v582 = vld [vmem:[%s0 + $0xf0] sm:$0xff]
          %v583 = vld [vmem:[%s0 + $0xf8] sm:$0xff]
          %v584 = vld [vmem:[%s0 + $0x100] sm:$0xff]
          %v585 = vld [vmem:[%s0 + $0x108] sm:$0xff]
          %v586 = vld [vmem:[%s0 + $0x110] sm:$0xff]
          %v587 = vld [vmem:[%s0 + $0x118] sm:$0xff]
          %v588 = vld [vmem:[%s0 + $0x120] sm:$0xff]
          %v589 = vld [vmem:[%s0 + $0x128] sm:$0xff]
          %v590 = vld [vmem:[%s0 + $0x130] sm:$0xff]
          %v591 = vld [vmem:[%s0 + $0x138] sm:$0xff]
          %v592 = vld [vmem:[%s0 + $0x140] sm:$0xff]
          %v593 = vld [vmem:[%s0 + $0x148] sm:$0xff]
          %v594 = vld [vmem:[%s0 + $0x150] sm:$0xff]
          %v595 = vld [vmem:[%s0 + $0x158] sm:$0xff]
          %v596 = vld [vmem:[%s0 + $0x160] sm:$0xff]
          %v597 = vld [vmem:[%s0 + $0x168] sm:$0xff]
          %v598 = vld [vmem:[%s0 + $0x170] sm:$0xff]
          %v599 = vld [vmem:[%s0 + $0x178] sm:$0xff]
          %v600 = vld [vmem:[%s0 + $0x180] sm:$0xff]
          %v601 = vld [vmem:[%s0 + $0x188] sm:$0xf]
          %v602 = vld [vmem:[#allocation3] sm:$0xff]
          %v603 = vld [vmem:[#allocation3 + $0x8] sm:$0xff]
          %v604 = vld [vmem:[#allocation3 + $0x10] sm:$0xff]
          %v605 = vld [vmem:[#allocation3 + $0x18] sm:$0xff]
          %vm606 = vcmask 556032
          %v608 = vsel %vm606, %v603, 0
          %v611 = vsel %vm606, %v605, 0
          %vm613 = vcmask 1043456
          %v615 = vsel %vm613, %v576, 0
          %617 = vmatprep.subr.mxu0 0.0
          %618 = vmatpush1.msra.mxu0 %v567
          %619 = vmatprep.subr.mxu0 0.0
          %620 = vmatpush1.msra.mxu0 %v566
          %621 = vmatprep.subr.mxu0 0.0
          %622 = vmatpush1.msra.mxu0 %v565
          %623 = vmatprep.subr.mxu0 0.0
          %624 = vmatpush1.msra.mxu0 %v564
          %625 = vmatprep.subr.mxu0 0.0
          %626 = vmatpush1.msra.mxu0 %v563
          %627 = vmatprep.subr.mxu0 0.0
          %628 = vmatpush1.msra.mxu0 %v562
          %629 = vmatprep.subr.mxu0 0.0
          %630 = vmatpush1.msra.mxu0 %v561
          %631 = vmatprep.subr.mxu0 0.0
          %632 = vmatpush1.msra.mxu0 %v560
          %633 = vmatprep.subr.mxu0 0.0
          %634 = vmatpush1.msra.mxu0 %v559
          %635 = vmatprep.subr.mxu0 0.0
          %636 = vmatpush1.msra.mxu0 %v558
          %637 = vmatprep.subr.mxu0 0.0
          %638 = vmatpush1.msra.mxu0 %v557
          %639 = vmatprep.subr.mxu0 0.0
          %640 = vmatpush1.msra.mxu0 %v556
          %641 = vmatprep.subr.mxu0 0.0
          %642 = vmatpush1.msra.mxu0 %v555
          %643 = vmatprep.subr.mxu0 0.0
          %644 = vmatpush1.msra.mxu0 %v554
          %645 = vmatprep.subr.mxu0 0.0
          %646 = vmatpush1.msra.mxu0 %v553
          %647 = vmatprep.subr.mxu0 0.0
          %648 = vmatpush1.msra.mxu0 %v552
          %649 = vmatprep.subr.mxu0 0.0
          %650 = vmatpush2.msra.mxu0 0.0
          %651 = vmatprep.subr.mxu0 0.0
          %652 = vmatpush2.msra.mxu0 0.0
          %653 = vmatprep.subr.mxu0 0.0
          %654 = vmatpush2.msra.mxu0 0.0
          %655 = vmatprep.subr.mxu0 0.0
          %656 = vmatpush2.msra.mxu0 0.0
          %657 = vmatprep.subr.mxu0 0.0
          %658 = vmatpush2.msra.mxu0 0.0
          %659 = vmatprep.subr.mxu0 0.0
          %660 = vmatpush2.msra.mxu0 0.0
          %661 = vmatprep.subr.mxu0 0.0
          %662 = vmatpush2.msra.mxu0 0.0
          %663 = vmatprep.subr.mxu0 0.0
          %664 = vmatpush2.msra.mxu0 %v615
          %665 = vmatprep.subr.mxu0 0.0
          %666 = vmatpush2.msra.mxu0 %v575
          %667 = vmatprep.subr.mxu0 0.0
          %668 = vmatpush2.msra.mxu0 %v574
          %669 = vmatprep.subr.mxu0 0.0
          %670 = vmatpush2.msra.mxu0 %v573
          %671 = vmatprep.subr.mxu0 0.0
          %672 = vmatpush2.msra.mxu0 %v572
          %673 = vmatprep.subr.mxu0 0.0
          %674 = vmatpush2.msra.mxu0 %v571
          %675 = vmatprep.subr.mxu0 0.0
          %676 = vmatpush2.msra.mxu0 %v570
          %677 = vmatprep.subr.mxu0 0.0
          %678 = vmatpush2.msra.mxu0 %v569
          %679 = vmatprep.subr.mxu0 0.0
          %680 = vmatpush2.msra.mxu0 %v568
          %681 = vmatprep.mubr.f32.mxu0 %v608
          %682 = vmatmul.mubr.f32.gmra.mxu0 %v602
          %v683 = vpop.f32.mrf.mxu0
          %v684 = vadd.f32 0.0, %v683
          %v685 = vpop.f32.mrf.mxu0
          %686 = vmatprep.mubr.f32.mxu0 %v611
          %687 = vmatmul.mubr.f32.gmra.mxu0 %v604
          %v688 = vpop.f32.mrf.mxu0
          %v689 = vadd.f32 0.0, %v688
          %v690 = vpop.f32.mrf.mxu0
          %691 = vdwg.mxu0
          %v693 = vsel %vm613, %v601, 0
          %695 = vmatprep.subr.mxu0 0.0
          %696 = vmatpush1.msra.mxu0 %v592
          %697 = vmatprep.subr.mxu0 0.0
          %698 = vmatpush1.msra.mxu0 %v591
          %699 = vmatprep.subr.mxu0 0.0
          %700 = vmatpush1.msra.mxu0 %v590
          %701 = vmatprep.subr.mxu0 0.0
          %702 = vmatpush1.msra.mxu0 %v589
          %703 = vmatprep.subr.mxu0 0.0
          %704 = vmatpush1.msra.mxu0 %v588
          %705 = vmatprep.subr.mxu0 0.0
          %706 = vmatpush1.msra.mxu0 %v587
          %707 = vmatprep.subr.mxu0 0.0
          %708 = vmatpush1.msra.mxu0 %v586
          %709 = vmatprep.subr.mxu0 0.0
          %710 = vmatpush1.msra.mxu0 %v585
          %711 = vmatprep.subr.mxu0 0.0
          %712 = vmatpush1.msra.mxu0 %v584
          %713 = vmatprep.subr.mxu0 0.0
          %714 = vmatpush1.msra.mxu0 %v583
          %715 = vmatprep.subr.mxu0 0.0
          %716 = vmatpush1.msra.mxu0 %v582
          %717 = vmatprep.subr.mxu0 0.0
          %718 = vmatpush1.msra.mxu0 %v581
          %719 = vmatprep.subr.mxu0 0.0
          %720 = vmatpush1.msra.mxu0 %v580
          %721 = vmatprep.subr.mxu0 0.0
          %722 = vmatpush1.msra.mxu0 %v579
          %723 = vmatprep.subr.mxu0 0.0
          %724 = vmatpush1.msra.mxu0 %v578
          %725 = vmatprep.subr.mxu0 0.0
          %726 = vmatpush1.msra.mxu0 %v577
          %727 = vmatprep.subr.mxu0 0.0
          %728 = vmatpush2.msra.mxu0 0.0
          %729 = vmatprep.subr.mxu0 0.0
          %730 = vmatpush2.msra.mxu0 0.0
          %731 = vmatprep.subr.mxu0 0.0
          %732 = vmatpush2.msra.mxu0 0.0
          %733 = vmatprep.subr.mxu0 0.0
          %734 = vmatpush2.msra.mxu0 0.0
          %735 = vmatprep.subr.mxu0 0.0
          %736 = vmatpush2.msra.mxu0 0.0
          %737 = vmatprep.subr.mxu0 0.0
          %738 = vmatpush2.msra.mxu0 0.0
          %739 = vmatprep.subr.mxu0 0.0
          %740 = vmatpush2.msra.mxu0 0.0
          %741 = vmatprep.subr.mxu0 0.0
          %742 = vmatpush2.msra.mxu0 %v693
          %743 = vmatprep.subr.mxu0 0.0
          %744 = vmatpush2.msra.mxu0 %v600
          %745 = vmatprep.subr.mxu0 0.0
          %746 = vmatpush2.msra.mxu0 %v599
          %747 = vmatprep.subr.mxu0 0.0
          %748 = vmatpush2.msra.mxu0 %v598
          %749 = vmatprep.subr.mxu0 0.0
          %750 = vmatpush2.msra.mxu0 %v597
          %751 = vmatprep.subr.mxu0 0.0
          %752 = vmatpush2.msra.mxu0 %v596
          %753 = vmatprep.subr.mxu0 0.0
          %754 = vmatpush2.msra.mxu0 %v595
          %755 = vmatprep.subr.mxu0 0.0
          %756 = vmatpush2.msra.mxu0 %v594
          %757 = vmatprep.subr.mxu0 0.0
          %758 = vmatpush2.msra.mxu0 %v593
          %759 = vmatprep.mubr.f32.mxu0 %v608
          %760 = vmatmul.mubr.f32.gmra.mxu0 %v602
          %v761 = vpop.f32.mrf.mxu0
          %v762 = vadd.f32 0.0, %v761
          %v763 = vpop.f32.mrf.mxu0
          %764 = vmatprep.mubr.f32.mxu0 %v611
          %765 = vmatmul.mubr.f32.gmra.mxu0 %v604
          %v766 = vpop.f32.mrf.mxu0
          %v767 = vadd.f32 0.0, %v766
          %v768 = vpop.f32.mrf.mxu0
          %769 = vdwg.mxu0
          %v770 = vld [vmem:[#allocation6] sm:$0xff]
          %v771 = vld [vmem:[#allocation6 + $0x8] sm:$0xff]
          %v772 = vld [vmem:[#allocation8] sm:$0x1]
          %v774 = vlaneseq
          %v775 = vshrl.u32 %v774, 7
          %v776 = vsub.s32 0, %v775
          %v777 = vrot.slane %v772, %v776
          %vm779 = vcmask 130048
          %v781 = vsel %vm779, %v684, 0
          %v784 = vsel %vm779, %v689, 0
          %v787 = vsel %vm779, %v762, 0
          %v790 = vsel %vm779, %v767, 0
          %792 = vmatprep.subr.mxu0 0.0
          %793 = vmatpush1.msra.mxu0 0.0
          %794 = vmatprep.subr.mxu0 0.0
          %795 = vmatpush1.msra.mxu0 0.0
          %796 = vmatprep.subr.mxu0 0.0
          %797 = vmatpush1.msra.mxu0 0.0
          %798 = vmatprep.subr.mxu0 0.0
          %799 = vmatpush1.msra.mxu0 0.0
          %800 = vmatprep.subr.mxu0 0.0
          %801 = vmatpush1.msra.mxu0 0.0
          %802 = vmatprep.subr.mxu0 0.0
          %803 = vmatpush1.msra.mxu0 0.0
          %804 = vmatprep.subr.mxu0 0.0
          %805 = vmatpush1.msra.mxu0 0.0
          %806 = vmatprep.subr.mxu0 0.0
          %807 = vmatpush1.msra.mxu0 0.0
          %808 = vmatprep.subr.mxu0 0.0
          %809 = vmatpush1.msra.mxu0 0.0
          %810 = vmatprep.subr.mxu0 0.0
          %811 = vmatpush1.msra.mxu0 0.0
          %812 = vmatprep.subr.mxu0 0.0
          %813 = vmatpush1.msra.mxu0 0.0
          %814 = vmatprep.subr.mxu0 0.0
          %815 = vmatpush1.msra.mxu0 0.0
          %816 = vmatprep.subr.mxu0 0.0
          %817 = vmatpush1.msra.mxu0 0.0
          %818 = vmatprep.subr.mxu0 0.0
          %819 = vmatpush1.msra.mxu0 0.0
          %820 = vmatprep.subr.mxu0 0.0
          %821 = vmatpush1.msra.mxu0 %v771
          %822 = vmatprep.subr.mxu0 0.0
          %823 = vmatpush1.msra.mxu0 %v770
          %824 = vmatprep.subr.mxu0 0.0
          %825 = vmatpush2.msra.mxu0 0.0
          %826 = vmatprep.subr.mxu0 0.0
          %827 = vmatpush2.msra.mxu0 0.0
          %828 = vmatprep.subr.mxu0 0.0
          %829 = vmatpush2.msra.mxu0 0.0
          %830 = vmatprep.subr.mxu0 0.0
          %831 = vmatpush2.msra.mxu0 0.0
          %832 = vmatprep.subr.mxu0 0.0
          %833 = vmatpush2.msra.mxu0 0.0
          %834 = vmatprep.subr.mxu0 0.0
          %835 = vmatpush2.msra.mxu0 0.0
          %836 = vmatprep.subr.mxu0 0.0
          %837 = vmatpush2.msra.mxu0 0.0
          %838 = vmatprep.subr.mxu0 0.0
          %839 = vmatpush2.msra.mxu0 0.0
          %840 = vmatprep.subr.mxu0 0.0
          %841 = vmatpush2.msra.mxu0 0.0
          %842 = vmatprep.subr.mxu0 0.0
          %843 = vmatpush2.msra.mxu0 0.0
          %844 = vmatprep.subr.mxu0 0.0
          %845 = vmatpush2.msra.mxu0 0.0
          %846 = vmatprep.subr.mxu0 0.0
          %847 = vmatpush2.msra.mxu0 0.0
          %848 = vmatprep.subr.mxu0 0.0
          %849 = vmatpush2.msra.mxu0 0.0
          %850 = vmatprep.subr.mxu0 0.0
          %851 = vmatpush2.msra.mxu0 0.0
          %852 = vmatprep.subr.mxu0 0.0
          %853 = vmatpush2.msra.mxu0 0.0
          %854 = vmatprep.subr.mxu0 0.0
          %855 = vmatpush2.msra.mxu0 0.0
          %856 = vmatprep.mubr.f32.mxu0 0.0
          %857 = vmatmul.mubr.f32.gmra.mxu0 %v781
          %v858 = vpop.f32.mrf.mxu0
          %v859 = vadd.f32 %v777, %v858
          %v860 = vpop.f32.mrf.mxu0
          %861 = vmatprep.mubr.f32.mxu0 0.0
          %862 = vmatmul.mubr.f32.gmra.mxu0 %v784
          %v863 = vpop.f32.mrf.mxu0
          %v864 = vadd.f32 %v777, %v863
          %v865 = vpop.f32.mrf.mxu0
          %866 = vmatprep.mubr.f32.mxu0 0.0
          %867 = vmatmul.mubr.f32.gmra.mxu0 %v787
          %v868 = vpop.f32.mrf.mxu0
          %v869 = vadd.f32 %v777, %v868
          %v870 = vpop.f32.mrf.mxu0
          %871 = vmatprep.mubr.f32.mxu0 0.0
          %872 = vmatmul.mubr.f32.gmra.mxu0 %v790
          %v873 = vpop.f32.mrf.mxu0
          %v874 = vadd.f32 %v777, %v873
          %v875 = vpop.f32.mrf.mxu0
          %876 = vdwg.mxu0
          %v877 = vmax.f32 %v859, 0.0
          %v878 = vmax.f32 %v864, 0.0
          %v879 = vmax.f32 %v869, 0.0
          %v880 = vmax.f32 %v874, 0.0
          %v884 = vunpack.c.l.s4 1983009808
          %v885 = vunpack.c.0.s8 %v884
          %v886 = vlaneseq
          %v887 = vshrl.u32 %v886, 7
          %v888 = vsub.s32 %v885, %v887
          %v889 = vrot.slane %v877, %v888
          %v891 = vunpack.c.l.s4 1983009808
          %v892 = vunpack.c.0.s8 %v891
          %v893 = vlaneseq
          %v894 = vshrl.u32 %v893, 7
          %v895 = vsub.s32 %v892, %v894
          %v896 = vrot.slane %v879, %v895
          %vm897 = vcmask 1044484
          %v898 = vsel %vm897, %v889, %v889
          %vm899 = vcmask 1046534
          %v900 = vsel %vm899, %v889, %v898
          %v901 = vrot.slane %v896, 7
          %vm902 = vcmask 1041409
          %v903 = vsel %vm902, %v901, %v900
          %vm904 = vcmask 1043459
          %v905 = vsel %vm904, %v901, %v903
          %vm906 = vcmask 1045509
          %v907 = vsel %vm906, %v901, %v905
          %vm908 = vcmask 1047559
          %v909 = vsel %vm908, %v901, %v907
          %911 = vst [vmem:[#allocation2] sm:$0x3] %v909
          %v912 = vrot.slane %v889, 1
          %v913 = vsel %vm897, %v912, %v912
          %v914 = vsel %vm899, %v912, %v913
          %v915 = vsel %vm902, %v896, %v914
          %v916 = vsel %vm904, %v896, %v915
          %v917 = vsel %vm906, %v896, %v916
          %v918 = vsel %vm908, %v896, %v917
          %920 = vst [vmem:[#allocation2 + $0x2] sm:$0x3] %v918
          %v921 = vcombine.high %v889, %v889
          %v922 = vcombine.high %v896, %v896
          %v923 = vsel %vm897, %v921, %v921
          %v924 = vsel %vm899, %v921, %v923
          %v925 = vrot.slane %v922, 7
          %v926 = vsel %vm902, %v925, %v924
          %v927 = vsel %vm904, %v925, %v926
          %v928 = vsel %vm906, %v925, %v927
          %v929 = vsel %vm908, %v925, %v928
          %931 = vst [vmem:[#allocation2 + $0x4] sm:$0x3] %v929
          %v932 = vrot.slane %v921, 1
          %v933 = vsel %vm897, %v932, %v932
          %v934 = vsel %vm899, %v932, %v933
          %v935 = vsel %vm902, %v922, %v934
          %v936 = vsel %vm904, %v922, %v935
          %v937 = vsel %vm906, %v922, %v936
          %v938 = vsel %vm908, %v922, %v937
          %940 = vst [vmem:[#allocation2 + $0x6] sm:$0x3] %v938
          %v941 = vcombine.high %v877, %v877
          %v943 = vunpack.c.l.s4 1983009808
          %v944 = vunpack.c.0.s8 %v943
          %v945 = vlaneseq
          %v946 = vshrl.u32 %v945, 7
          %v947 = vsub.s32 %v944, %v946
          %v948 = vrot.slane %v941, %v947
          %v949 = vcombine.high %v879, %v879
          %v951 = vunpack.c.l.s4 1983009808
          %v952 = vunpack.c.0.s8 %v951
          %v953 = vlaneseq
          %v954 = vshrl.u32 %v953, 7
          %v955 = vsub.s32 %v952, %v954
          %v956 = vrot.slane %v949, %v955
          %v957 = vsel %vm897, %v948, %v948
          %v958 = vsel %vm899, %v948, %v957
          %v959 = vrot.slane %v956, 7
          %v960 = vsel %vm902, %v959, %v958
          %v961 = vsel %vm904, %v959, %v960
          %v962 = vsel %vm906, %v959, %v961
          %v963 = vsel %vm908, %v959, %v962
          %965 = vst [vmem:[#allocation2 + $0x8] sm:$0x3] %v963
          %v966 = vrot.slane %v948, 1
          %v967 = vsel %vm897, %v966, %v966
          %v968 = vsel %vm899, %v966, %v967
          %v969 = vsel %vm902, %v956, %v968
          %v970 = vsel %vm904, %v956, %v969
          %v971 = vsel %vm906, %v956, %v970
          %v972 = vsel %vm908, %v956, %v971
          %974 = vst [vmem:[#allocation2 + $0xa] sm:$0x3] %v972
          %v975 = vcombine.high %v948, %v948
          %v976 = vcombine.high %v956, %v956
          %v977 = vsel %vm897, %v975, %v975
          %v978 = vsel %vm899, %v975, %v977
          %v979 = vrot.slane %v976, 7
          %v980 = vsel %vm902, %v979, %v978
          %v981 = vsel %vm904, %v979, %v980
          %v982 = vsel %vm906, %v979, %v981
          %v983 = vsel %vm908, %v979, %v982
          %985 = vst [vmem:[#allocation2 + $0xc] sm:$0x3] %v983
          %v986 = vrot.slane %v975, 1
          %v987 = vsel %vm897, %v986, %v986
          %v988 = vsel %vm899, %v986, %v987
          %v989 = vsel %vm902, %v976, %v988
          %v990 = vsel %vm904, %v976, %v989
          %v991 = vsel %vm906, %v976, %v990
          %v992 = vsel %vm908, %v976, %v991
          %994 = vst [vmem:[#allocation2 + $0xe] sm:$0x3] %v992
          %v998 = vunpack.c.l.s4 1983009808
          %v999 = vunpack.c.0.s8 %v998
          %v1000 = vlaneseq
          %v1001 = vshrl.u32 %v1000, 7
          %v1002 = vsub.s32 %v999, %v1001
          %v1003 = vrot.slane %v878, %v1002
          %v1005 = vunpack.c.l.s4 1983009808
          %v1006 = vunpack.c.0.s8 %v1005
          %v1007 = vlaneseq
          %v1008 = vshrl.u32 %v1007, 7
          %v1009 = vsub.s32 %v1006, %v1008
          %v1010 = vrot.slane %v880, %v1009
          %v1011 = vsel %vm897, %v1003, %v1003
          %v1012 = vsel %vm899, %v1003, %v1011
          %v1013 = vrot.slane %v1010, 7
          %v1014 = vsel %vm902, %v1013, %v1012
          %v1015 = vsel %vm904, %v1013, %v1014
          %v1016 = vsel %vm906, %v1013, %v1015
          %v1017 = vsel %vm908, %v1013, %v1016
          %1019 = vst [vmem:[#allocation2 + $0x10] sm:$0x3] %v1017
          %v1020 = vrot.slane %v1003, 1
          %v1021 = vsel %vm897, %v1020, %v1020
          %v1022 = vsel %vm899, %v1020, %v1021
          %v1023 = vsel %vm902, %v1010, %v1022
          %v1024 = vsel %vm904, %v1010, %v1023
          %v1025 = vsel %vm906, %v1010, %v1024
          %v1026 = vsel %vm908, %v1010, %v1025
          %1028 = vst [vmem:[#allocation2 + $0x12] sm:$0x3] %v1026
          %v1029 = vcombine.high %v1003, %v1003
          %v1030 = vcombine.high %v1010, %v1010
          %v1031 = vsel %vm897, %v1029, %v1029
          %v1032 = vsel %vm899, %v1029, %v1031
          %v1033 = vrot.slane %v1030, 7
          %v1034 = vsel %vm902, %v1033, %v1032
          %v1035 = vsel %vm904, %v1033, %v1034
          %v1036 = vsel %vm906, %v1033, %v1035
          %v1037 = vsel %vm908, %v1033, %v1036
          %1039 = vst [vmem:[#allocation2 + $0x14] sm:$0x3] %v1037
          %v1040 = vrot.slane %v1029, 1
          %v1041 = vsel %vm897, %v1040, %v1040
          %v1042 = vsel %vm899, %v1040, %v1041
          %v1043 = vsel %vm902, %v1030, %v1042
          %v1044 = vsel %vm904, %v1030, %v1043
          %v1045 = vsel %vm906, %v1030, %v1044
          %v1046 = vsel %vm908, %v1030, %v1045
          %1048 = vst [vmem:[#allocation2 + $0x16] sm:$0x3] %v1046
          %v1049 = vcombine.high %v878, %v878
          %v1051 = vunpack.c.l.s4 1983009808
          %v1052 = vunpack.c.0.s8 %v1051
          %v1053 = vlaneseq
          %v1054 = vshrl.u32 %v1053, 7
          %v1055 = vsub.s32 %v1052, %v1054
          %v1056 = vrot.slane %v1049, %v1055
          %v1057 = vcombine.high %v880, %v880
          %v1059 = vunpack.c.l.s4 1983009808
          %v1060 = vunpack.c.0.s8 %v1059
          %v1061 = vlaneseq
          %v1062 = vshrl.u32 %v1061, 7
          %v1063 = vsub.s32 %v1060, %v1062
          %v1064 = vrot.slane %v1057, %v1063
          %v1065 = vsel %vm897, %v1056, %v1056
          %v1066 = vsel %vm899, %v1056, %v1065
          %v1067 = vrot.slane %v1064, 7
          %v1068 = vsel %vm902, %v1067, %v1066
          %v1069 = vsel %vm904, %v1067, %v1068
          %v1070 = vsel %vm906, %v1067, %v1069
          %v1071 = vsel %vm908, %v1067, %v1070
          %1073 = vst [vmem:[#allocation2 + $0x18] sm:$0x3] %v1071
          %v1074 = vrot.slane %v1056, 1
          %v1075 = vsel %vm897, %v1074, %v1074
          %v1076 = vsel %vm899, %v1074, %v1075
          %v1077 = vsel %vm902, %v1064, %v1076
          %v1078 = vsel %vm904, %v1064, %v1077
          %v1079 = vsel %vm906, %v1064, %v1078
          %v1080 = vsel %vm908, %v1064, %v1079
          %1082 = vst [vmem:[#allocation2 + $0x1a] sm:$0x3] %v1080
          %v1083 = vcombine.high %v1056, %v1056
          %v1084 = vcombine.high %v1064, %v1064
          %v1085 = vsel %vm897, %v1083, %v1083
          %v1086 = vsel %vm899, %v1083, %v1085
          %v1087 = vrot.slane %v1084, 7
          %v1088 = vsel %vm902, %v1087, %v1086
          %v1089 = vsel %vm904, %v1087, %v1088
          %v1090 = vsel %vm906, %v1087, %v1089
          %v1091 = vsel %vm908, %v1087, %v1090
          %1093 = vst [vmem:[#allocation2 + $0x1c] sm:$0x3] %v1091
          %v1094 = vrot.slane %v1083, 1
          %v1095 = vsel %vm897, %v1094, %v1094
          %v1096 = vsel %vm899, %v1094, %v1095
          %v1097 = vsel %vm902, %v1084, %v1096
          %v1098 = vsel %vm904, %v1084, %v1097
          %v1099 = vsel %vm906, %v1084, %v1098
          %v1100 = vsel %vm908, %v1084, %v1099
          %1102 = vst [vmem:[#allocation2 + $0x1e] sm:$0x3] %v1100
          %1103 = vst [vmem:[#allocation18] sm:$0xff] 0.0
          %1104 = vst [vmem:[#allocation18 + $0x8] sm:$0xff] 0.0
        $region100: #{tpu_custom_call.1} parent=59 // pred_fallthru
          _
        %v1105 = vld [vmem:[#allocation2] sm:$0xff]
        %v1106 = vld [vmem:[#allocation2 + $0x8] sm:$0xff]
        %v1107 = vld [vmem:[#allocation2 + $0x10] sm:$0xff]
        %v1108 = vld [vmem:[#allocation2 + $0x18] sm:$0xff]
        %v1113 = vcombine.high %v1105, %v1105
        %v1115 = vunpack.c.l.s4 1983009808
        %v1116 = vunpack.c.0.s8 %v1115
        %v1117 = vlaneseq
        %v1118 = vshrl.u32 %v1117, 7
        %v1119 = vsub.s32 %v1116, %v1118
        %v1120 = vrot.slane %v1105, %v1119
        %v1122 = vunpack.c.l.s4 1983009808
        %v1123 = vunpack.c.0.s8 %v1122
        %v1124 = vlaneseq
        %v1125 = vshrl.u32 %v1124, 7
        %v1126 = vsub.s32 %v1123, %v1125
        %v1127 = vrot.slane %v1113, %v1126
        %v1128 = vcombine.high %v1120, %v1120
        %v1129 = vcombine.high %v1127, %v1127
        %v1130 = vcombine.high %v1106, %v1106
        %v1132 = vunpack.c.l.s4 1983009808
        %v1133 = vunpack.c.0.s8 %v1132
        %v1134 = vlaneseq
        %v1135 = vshrl.u32 %v1134, 7
        %v1136 = vsub.s32 %v1133, %v1135
        %v1137 = vrot.slane %v1106, %v1136
        %v1139 = vunpack.c.l.s4 1983009808
        %v1140 = vunpack.c.0.s8 %v1139
        %v1141 = vlaneseq
        %v1142 = vshrl.u32 %v1141, 7
        %v1143 = vsub.s32 %v1140, %v1142
        %v1144 = vrot.slane %v1130, %v1143
        %v1145 = vcombine.high %v1137, %v1137
        %v1146 = vcombine.high %v1144, %v1144
        %v1147 = vcombine.high %v1107, %v1107
        %v1149 = vunpack.c.l.s4 1983009808
        %v1150 = vunpack.c.0.s8 %v1149
        %v1151 = vlaneseq
        %v1152 = vshrl.u32 %v1151, 7
        %v1153 = vsub.s32 %v1150, %v1152
        %v1154 = vrot.slane %v1107, %v1153
        %v1156 = vunpack.c.l.s4 1983009808
        %v1157 = vunpack.c.0.s8 %v1156
        %v1158 = vlaneseq
        %v1159 = vshrl.u32 %v1158, 7
        %v1160 = vsub.s32 %v1157, %v1159
        %v1161 = vrot.slane %v1147, %v1160
        %v1162 = vcombine.high %v1154, %v1154
        %v1163 = vcombine.high %v1161, %v1161
        %v1164 = vcombine.high %v1108, %v1108
        %v1166 = vunpack.c.l.s4 1983009808
        %v1167 = vunpack.c.0.s8 %v1166
        %v1168 = vlaneseq
        %v1169 = vshrl.u32 %v1168, 7
        %v1170 = vsub.s32 %v1167, %v1169
        %v1171 = vrot.slane %v1108, %v1170
        %v1173 = vunpack.c.l.s4 1983009808
        %v1174 = vunpack.c.0.s8 %v1173
        %v1175 = vlaneseq
        %v1176 = vshrl.u32 %v1175, 7
        %v1177 = vsub.s32 %v1174, %v1176
        %v1178 = vrot.slane %v1164, %v1177
        %v1179 = vcombine.high %v1171, %v1171
        %v1180 = vcombine.high %v1178, %v1178
        %v1197 = vpack.c.bf16 %v1120, %v1120
        %v1198 = vpack.c.bf16 %v1128, %v1128
        %v1199 = vpack.c.bf16 %v1127, %v1127
        %v1200 = vpack.c.bf16 %v1129, %v1129
        %v1201 = vpack.c.bf16 %v1137, %v1137
        %v1202 = vpack.c.bf16 %v1145, %v1145
        %v1203 = vpack.c.bf16 %v1144, %v1144
        %v1204 = vpack.c.bf16 %v1146, %v1146
        %v1205 = vpack.c.bf16 %v1154, %v1154
        %v1206 = vpack.c.bf16 %v1162, %v1162
        %v1207 = vpack.c.bf16 %v1161, %v1161
        %v1208 = vpack.c.bf16 %v1163, %v1163
        %v1209 = vpack.c.bf16 %v1171, %v1171
        %v1210 = vpack.c.bf16 %v1179, %v1179
        %v1211 = vpack.c.bf16 %v1178, %v1178
        %v1212 = vpack.c.bf16 %v1180, %v1180
        %v1213 = vld [vmem:[%s462] sm:$0xff]
        %v1214 = vld [vmem:[%s462 + $0x8] sm:$0xff]
        %v1215 = vld [vmem:[%s462 + $0x10] sm:$0xff]
        %v1216 = vld [vmem:[%s462 + $0x18] sm:$0xff]
        %v1217 = vld [vmem:[%s462 + $0x20] sm:$0xff]
        %v1218 = vld [vmem:[%s462 + $0x28] sm:$0xff]
        %v1219 = vld [vmem:[%s462 + $0x30] sm:$0xff]
        %v1220 = vld [vmem:[%s462 + $0x38] sm:$0xff]
        %v1221 = vld [vmem:[%s462 + $0x40] sm:$0xff]
        %v1222 = vld [vmem:[%s462 + $0x48] sm:$0xff]
        %v1223 = vld [vmem:[%s462 + $0x50] sm:$0xff]
        %v1224 = vld [vmem:[%s462 + $0x58] sm:$0xff]
        %v1225 = vld [vmem:[%s462 + $0x60] sm:$0xff]
        %v1226 = vld [vmem:[%s462 + $0x68] sm:$0xff]
        %v1227 = vld [vmem:[%s462 + $0x70] sm:$0xff]
        %v1228 = vld [vmem:[%s462 + $0x78] sm:$0xff]
        %v1229 = vld [vmem:[%s462 + $0x80] sm:$0xff]
        %v1230 = vld [vmem:[%s462 + $0x88] sm:$0xff]
        %v1231 = vld [vmem:[%s462 + $0x90] sm:$0xff]
        %v1232 = vld [vmem:[%s462 + $0x98] sm:$0xff]
        %v1233 = vld [vmem:[%s462 + $0xa0] sm:$0xff]
        %v1234 = vld [vmem:[%s462 + $0xa8] sm:$0xff]
        %v1235 = vld [vmem:[%s462 + $0xb0] sm:$0xff]
        %v1236 = vld [vmem:[%s462 + $0xb8] sm:$0xff]
        %v1237 = vld [vmem:[%s462 + $0xc0] sm:$0xff]
        %v1238 = vld [vmem:[%s462 + $0xc8] sm:$0xff]
        %v1239 = vld [vmem:[%s462 + $0xd0] sm:$0xff]
        %v1240 = vld [vmem:[%s462 + $0xd8] sm:$0xff]
        %v1241 = vld [vmem:[%s462 + $0xe0] sm:$0xff]
        %v1242 = vld [vmem:[%s462 + $0xe8] sm:$0xff]
        %v1243 = vld [vmem:[%s462 + $0xf0] sm:$0xff]
        %v1244 = vld [vmem:[%s462 + $0xf8] sm:$0xff]
        %v1245 = vld [vmem:[%s462 + $0x100] sm:$0xff]
        %v1246 = vld [vmem:[%s462 + $0x108] sm:$0xff]
        %v1247 = vld [vmem:[%s462 + $0x110] sm:$0xff]
        %v1248 = vld [vmem:[%s462 + $0x118] sm:$0xff]
        %v1249 = vld [vmem:[%s462 + $0x120] sm:$0xff]
        %v1250 = vld [vmem:[%s462 + $0x128] sm:$0xff]
        %v1251 = vld [vmem:[%s462 + $0x130] sm:$0xff]
        %v1252 = vld [vmem:[%s462 + $0x138] sm:$0xff]
        %v1253 = vld [vmem:[%s462 + $0x140] sm:$0xff]
        %v1254 = vld [vmem:[%s462 + $0x148] sm:$0xff]
        %v1255 = vld [vmem:[%s462 + $0x150] sm:$0xff]
        %v1256 = vld [vmem:[%s462 + $0x158] sm:$0xff]
        %v1257 = vld [vmem:[%s462 + $0x160] sm:$0xff]
        %v1258 = vld [vmem:[%s462 + $0x168] sm:$0xff]
        %v1259 = vld [vmem:[%s462 + $0x170] sm:$0xff]
        %v1260 = vld [vmem:[%s462 + $0x178] sm:$0xff]
        %v1261 = vld [vmem:[%s462 + $0x180] sm:$0xff]
        %v1262 = vld [vmem:[%s462 + $0x188] sm:$0xff]
        %v1263 = vld [vmem:[%s462 + $0x190] sm:$0xff]
        %v1264 = vld [vmem:[%s462 + $0x198] sm:$0xff]
        %v1265 = vld [vmem:[%s462 + $0x1a0] sm:$0xff]
        %v1266 = vld [vmem:[%s462 + $0x1a8] sm:$0xff]
        %v1267 = vld [vmem:[%s462 + $0x1b0] sm:$0xff]
        %v1268 = vld [vmem:[%s462 + $0x1b8] sm:$0xff]
        %v1269 = vld [vmem:[%s462 + $0x1c0] sm:$0xff]
        %v1270 = vld [vmem:[%s462 + $0x1c8] sm:$0xff]
        %v1271 = vld [vmem:[%s462 + $0x1d0] sm:$0xff]
        %v1272 = vld [vmem:[%s462 + $0x1d8] sm:$0xff]
        %v1273 = vld [vmem:[%s462 + $0x1e0] sm:$0xff]
        %v1274 = vld [vmem:[%s462 + $0x1e8] sm:$0xff]
        %v1275 = vld [vmem:[%s462 + $0x1f0] sm:$0xff]
        %v1276 = vld [vmem:[%s462 + $0x1f8] sm:$0xff]
        %v1277 = vld [vmem:[%s462 + $0x200] sm:$0xff]
        %v1278 = vld [vmem:[%s462 + $0x208] sm:$0xff]
        %v1279 = vld [vmem:[%s462 + $0x210] sm:$0xff]
        %v1280 = vld [vmem:[%s462 + $0x218] sm:$0xff]
        %v1281 = vld [vmem:[%s462 + $0x220] sm:$0xff]
        %v1282 = vld [vmem:[%s462 + $0x228] sm:$0xff]
        %v1283 = vld [vmem:[%s462 + $0x230] sm:$0xff]
        %v1284 = vld [vmem:[%s462 + $0x238] sm:$0xff]
        %v1285 = vld [vmem:[%s462 + $0x240] sm:$0xff]
        %v1286 = vld [vmem:[%s462 + $0x248] sm:$0xff]
        %v1287 = vld [vmem:[%s462 + $0x250] sm:$0xff]
        %v1288 = vld [vmem:[%s462 + $0x258] sm:$0xff]
        %v1289 = vld [vmem:[%s462 + $0x260] sm:$0xff]
        %v1290 = vld [vmem:[%s462 + $0x268] sm:$0xff]
        %v1291 = vld [vmem:[%s462 + $0x270] sm:$0xff]
        %v1292 = vld [vmem:[%s462 + $0x278] sm:$0xff]
        %v1293 = vld [vmem:[%s462 + $0x280] sm:$0xff]
        %v1294 = vld [vmem:[%s462 + $0x288] sm:$0xff]
        %v1295 = vld [vmem:[%s462 + $0x290] sm:$0xff]
        %v1296 = vld [vmem:[%s462 + $0x298] sm:$0xff]
        %v1297 = vld [vmem:[%s462 + $0x2a0] sm:$0xff]
        %v1298 = vld [vmem:[%s462 + $0x2a8] sm:$0xff]
        %v1299 = vld [vmem:[%s462 + $0x2b0] sm:$0xff]
        %v1300 = vld [vmem:[%s462 + $0x2b8] sm:$0xff]
        %v1301 = vld [vmem:[%s462 + $0x2c0] sm:$0xff]
        %v1302 = vld [vmem:[%s462 + $0x2c8] sm:$0xff]
        %v1303 = vld [vmem:[%s462 + $0x2d0] sm:$0xff]
        %v1304 = vld [vmem:[%s462 + $0x2d8] sm:$0xff]
        %v1305 = vld [vmem:[%s462 + $0x2e0] sm:$0xff]
        %v1306 = vld [vmem:[%s462 + $0x2e8] sm:$0xff]
        %v1307 = vld [vmem:[%s462 + $0x2f0] sm:$0xff]
        %v1308 = vld [vmem:[%s462 + $0x2f8] sm:$0xff]
        %v1309 = vld [vmem:[%s462 + $0x300] sm:$0xff]
        %v1310 = vld [vmem:[%s462 + $0x308] sm:$0xff]
        %v1311 = vld [vmem:[%s462 + $0x310] sm:$0xff]
        %v1312 = vld [vmem:[%s462 + $0x318] sm:$0xff]
        %v1313 = vld [vmem:[%s462 + $0x320] sm:$0xff]
        %v1314 = vld [vmem:[%s462 + $0x328] sm:$0xff]
        %v1315 = vld [vmem:[%s462 + $0x330] sm:$0xff]
        %v1316 = vld [vmem:[%s462 + $0x338] sm:$0xff]
        %v1317 = vld [vmem:[%s462 + $0x340] sm:$0xff]
        %v1318 = vld [vmem:[%s462 + $0x348] sm:$0xff]
        %v1319 = vld [vmem:[%s462 + $0x350] sm:$0xff]
        %v1320 = vld [vmem:[%s462 + $0x358] sm:$0xff]
        %v1321 = vld [vmem:[%s462 + $0x360] sm:$0xff]
        %v1322 = vld [vmem:[%s462 + $0x368] sm:$0xff]
        %v1323 = vld [vmem:[%s462 + $0x370] sm:$0xff]
        %v1324 = vld [vmem:[%s462 + $0x378] sm:$0xff]
        %v1325 = vld [vmem:[%s462 + $0x380] sm:$0xff]
        %v1326 = vld [vmem:[%s462 + $0x388] sm:$0xff]
        %v1327 = vld [vmem:[%s462 + $0x390] sm:$0xff]
        %v1328 = vld [vmem:[%s462 + $0x398] sm:$0xff]
        %v1329 = vld [vmem:[%s462 + $0x3a0] sm:$0xff]
        %v1330 = vld [vmem:[%s462 + $0x3a8] sm:$0xff]
        %v1331 = vld [vmem:[%s462 + $0x3b0] sm:$0xff]
        %v1332 = vld [vmem:[%s462 + $0x3b8] sm:$0xff]
        %v1333 = vld [vmem:[%s462 + $0x3c0] sm:$0xff]
        %v1334 = vld [vmem:[%s462 + $0x3c8] sm:$0xff]
        %v1335 = vld [vmem:[%s462 + $0x3d0] sm:$0xff]
        %v1336 = vld [vmem:[%s462 + $0x3d8] sm:$0xff]
        %v1337 = vld [vmem:[%s462 + $0x3e0] sm:$0xff]
        %v1338 = vld [vmem:[%s462 + $0x3e8] sm:$0xff]
        %v1339 = vld [vmem:[%s462 + $0x3f0] sm:$0xff]
        %v1340 = vld [vmem:[%s462 + $0x3f8] sm:$0xff]
        %v1341 = vunpack.c.l.s8.bf16 %v1213
        %v1342 = vunpack.c.l.s8.bf16 %v1214
        %v1343 = vunpack.c.h.s8.bf16 %v1213
        %v1344 = vunpack.c.h.s8.bf16 %v1214
        %v1345 = vunpack.c.l.s8.bf16 %v1215
        %v1346 = vunpack.c.l.s8.bf16 %v1216
        %v1347 = vunpack.c.h.s8.bf16 %v1215
        %v1348 = vunpack.c.h.s8.bf16 %v1216
        %v1349 = vunpack.c.l.s8.bf16 %v1217
        %v1350 = vunpack.c.l.s8.bf16 %v1218
        %v1351 = vunpack.c.h.s8.bf16 %v1217
        %v1352 = vunpack.c.h.s8.bf16 %v1218
        %v1353 = vunpack.c.l.s8.bf16 %v1219
        %v1354 = vunpack.c.l.s8.bf16 %v1220
        %v1355 = vunpack.c.h.s8.bf16 %v1219
        %v1356 = vunpack.c.h.s8.bf16 %v1220
        %v1357 = vunpack.c.l.s8.bf16 %v1221
        %v1358 = vunpack.c.l.s8.bf16 %v1222
        %v1359 = vunpack.c.h.s8.bf16 %v1221
        %v1360 = vunpack.c.h.s8.bf16 %v1222
        %v1361 = vunpack.c.l.s8.bf16 %v1223
        %v1362 = vunpack.c.l.s8.bf16 %v1224
        %v1363 = vunpack.c.h.s8.bf16 %v1223
        %v1364 = vunpack.c.h.s8.bf16 %v1224
        %v1365 = vunpack.c.l.s8.bf16 %v1225
        %v1366 = vunpack.c.l.s8.bf16 %v1226
        %v1367 = vunpack.c.h.s8.bf16 %v1225
        %v1368 = vunpack.c.h.s8.bf16 %v1226
        %v1369 = vunpack.c.l.s8.bf16 %v1227
        %v1370 = vunpack.c.l.s8.bf16 %v1228
        %v1371 = vunpack.c.h.s8.bf16 %v1227
        %v1372 = vunpack.c.h.s8.bf16 %v1228
        %v1373 = vunpack.c.l.s8.bf16 %v1229
        %v1374 = vunpack.c.l.s8.bf16 %v1230
        %v1375 = vunpack.c.h.s8.bf16 %v1229
        %v1376 = vunpack.c.h.s8.bf16 %v1230
        %v1377 = vunpack.c.l.s8.bf16 %v1231
        %v1378 = vunpack.c.l.s8.bf16 %v1232
        %v1379 = vunpack.c.h.s8.bf16 %v1231
        %v1380 = vunpack.c.h.s8.bf16 %v1232
        %v1381 = vunpack.c.l.s8.bf16 %v1233
        %v1382 = vunpack.c.l.s8.bf16 %v1234
        %v1383 = vunpack.c.h.s8.bf16 %v1233
        %v1384 = vunpack.c.h.s8.bf16 %v1234
        %v1385 = vunpack.c.l.s8.bf16 %v1235
        %v1386 = vunpack.c.l.s8.bf16 %v1236
        %v1387 = vunpack.c.h.s8.bf16 %v1235
        %v1388 = vunpack.c.h.s8.bf16 %v1236
        %v1389 = vunpack.c.l.s8.bf16 %v1237
        %v1390 = vunpack.c.l.s8.bf16 %v1238
        %v1391 = vunpack.c.h.s8.bf16 %v1237
        %v1392 = vunpack.c.h.s8.bf16 %v1238
        %v1393 = vunpack.c.l.s8.bf16 %v1239
        %v1394 = vunpack.c.l.s8.bf16 %v1240
        %v1395 = vunpack.c.h.s8.bf16 %v1239
        %v1396 = vunpack.c.h.s8.bf16 %v1240
        %v1397 = vunpack.c.l.s8.bf16 %v1241
        %v1398 = vunpack.c.l.s8.bf16 %v1242
        %v1399 = vunpack.c.h.s8.bf16 %v1241
        %v1400 = vunpack.c.h.s8.bf16 %v1242
        %v1401 = vunpack.c.l.s8.bf16 %v1243
        %v1402 = vunpack.c.l.s8.bf16 %v1244
        %v1403 = vunpack.c.h.s8.bf16 %v1243
        %v1404 = vunpack.c.h.s8.bf16 %v1244
        %v1405 = vunpack.c.l.s8.bf16 %v1245
        %v1406 = vunpack.c.l.s8.bf16 %v1246
        %v1407 = vunpack.c.h.s8.bf16 %v1245
        %v1408 = vunpack.c.h.s8.bf16 %v1246
        %v1409 = vunpack.c.l.s8.bf16 %v1247
        %v1410 = vunpack.c.l.s8.bf16 %v1248
        %v1411 = vunpack.c.h.s8.bf16 %v1247
        %v1412 = vunpack.c.h.s8.bf16 %v1248
        %v1413 = vunpack.c.l.s8.bf16 %v1249
        %v1414 = vunpack.c.l.s8.bf16 %v1250
        %v1415 = vunpack.c.h.s8.bf16 %v1249
        %v1416 = vunpack.c.h.s8.bf16 %v1250
        %v1417 = vunpack.c.l.s8.bf16 %v1251
        %v1418 = vunpack.c.l.s8.bf16 %v1252
        %v1419 = vunpack.c.h.s8.bf16 %v1251
        %v1420 = vunpack.c.h.s8.bf16 %v1252
        %v1421 = vunpack.c.l.s8.bf16 %v1253
        %v1422 = vunpack.c.l.s8.bf16 %v1254
        %v1423 = vunpack.c.h.s8.bf16 %v1253
        %v1424 = vunpack.c.h.s8.bf16 %v1254
        %v1425 = vunpack.c.l.s8.bf16 %v1255
        %v1426 = vunpack.c.l.s8.bf16 %v1256
        %v1427 = vunpack.c.h.s8.bf16 %v1255
        %v1428 = vunpack.c.h.s8.bf16 %v1256
        %v1429 = vunpack.c.l.s8.bf16 %v1257
        %v1430 = vunpack.c.l.s8.bf16 %v1258
        %v1431 = vunpack.c.h.s8.bf16 %v1257
        %v1432 = vunpack.c.h.s8.bf16 %v1258
        %v1433 = vunpack.c.l.s8.bf16 %v1259
        %v1434 = vunpack.c.l.s8.bf16 %v1260
        %v1435 = vunpack.c.h.s8.bf16 %v1259
        %v1436 = vunpack.c.h.s8.bf16 %v1260
        %v1437 = vunpack.c.l.s8.bf16 %v1261
        %v1438 = vunpack.c.l.s8.bf16 %v1262
        %v1439 = vunpack.c.h.s8.bf16 %v1261
        %v1440 = vunpack.c.h.s8.bf16 %v1262
        %v1441 = vunpack.c.l.s8.bf16 %v1263
        %v1442 = vunpack.c.l.s8.bf16 %v1264
        %v1443 = vunpack.c.h.s8.bf16 %v1263
        %v1444 = vunpack.c.h.s8.bf16 %v1264
        %v1445 = vunpack.c.l.s8.bf16 %v1265
        %v1446 = vunpack.c.l.s8.bf16 %v1266
        %v1447 = vunpack.c.h.s8.bf16 %v1265
        %v1448 = vunpack.c.h.s8.bf16 %v1266
        %v1449 = vunpack.c.l.s8.bf16 %v1267
        %v1450 = vunpack.c.l.s8.bf16 %v1268
        %v1451 = vunpack.c.h.s8.bf16 %v1267
        %v1452 = vunpack.c.h.s8.bf16 %v1268
        %v1453 = vunpack.c.l.s8.bf16 %v1269
        %v1454 = vunpack.c.l.s8.bf16 %v1270
        %v1455 = vunpack.c.h.s8.bf16 %v1269
        %v1456 = vunpack.c.h.s8.bf16 %v1270
        %v1457 = vunpack.c.l.s8.bf16 %v1271
        %v1458 = vunpack.c.l.s8.bf16 %v1272
        %v1459 = vunpack.c.h.s8.bf16 %v1271
        %v1460 = vunpack.c.h.s8.bf16 %v1272
        %v1461 = vunpack.c.l.s8.bf16 %v1273
        %v1462 = vunpack.c.l.s8.bf16 %v1274
        %v1463 = vunpack.c.h.s8.bf16 %v1273
        %v1464 = vunpack.c.h.s8.bf16 %v1274
        %v1465 = vunpack.c.l.s8.bf16 %v1275
        %v1466 = vunpack.c.l.s8.bf16 %v1276
        %v1467 = vunpack.c.h.s8.bf16 %v1275
        %v1468 = vunpack.c.h.s8.bf16 %v1276
        %v1469 = vunpack.c.l.s8.bf16 %v1277
        %v1470 = vunpack.c.l.s8.bf16 %v1278
        %v1471 = vunpack.c.h.s8.bf16 %v1277
        %v1472 = vunpack.c.h.s8.bf16 %v1278
        %v1473 = vunpack.c.l.s8.bf16 %v1279
        %v1474 = vunpack.c.l.s8.bf16 %v1280
        %v1475 = vunpack.c.h.s8.bf16 %v1279
        %v1476 = vunpack.c.h.s8.bf16 %v1280
        %v1477 = vunpack.c.l.s8.bf16 %v1281
        %v1478 = vunpack.c.l.s8.bf16 %v1282
        %v1479 = vunpack.c.h.s8.bf16 %v1281
        %v1480 = vunpack.c.h.s8.bf16 %v1282
        %v1481 = vunpack.c.l.s8.bf16 %v1283
        %v1482 = vunpack.c.l.s8.bf16 %v1284
        %v1483 = vunpack.c.h.s8.bf16 %v1283
        %v1484 = vunpack.c.h.s8.bf16 %v1284
        %v1485 = vunpack.c.l.s8.bf16 %v1285
        %v1486 = vunpack.c.l.s8.bf16 %v1286
        %v1487 = vunpack.c.h.s8.bf16 %v1285
        %v1488 = vunpack.c.h.s8.bf16 %v1286
        %v1489 = vunpack.c.l.s8.bf16 %v1287
        %v1490 = vunpack.c.l.s8.bf16 %v1288
        %v1491 = vunpack.c.h.s8.bf16 %v1287
        %v1492 = vunpack.c.h.s8.bf16 %v1288
        %v1493 = vunpack.c.l.s8.bf16 %v1289
        %v1494 = vunpack.c.l.s8.bf16 %v1290
        %v1495 = vunpack.c.h.s8.bf16 %v1289
        %v1496 = vunpack.c.h.s8.bf16 %v1290
        %v1497 = vunpack.c.l.s8.bf16 %v1291
        %v1498 = vunpack.c.l.s8.bf16 %v1292
        %v1499 = vunpack.c.h.s8.bf16 %v1291
        %v1500 = vunpack.c.h.s8.bf16 %v1292
        %v1501 = vunpack.c.l.s8.bf16 %v1293
        %v1502 = vunpack.c.l.s8.bf16 %v1294
        %v1503 = vunpack.c.h.s8.bf16 %v1293
        %v1504 = vunpack.c.h.s8.bf16 %v1294
        %v1505 = vunpack.c.l.s8.bf16 %v1295
        %v1506 = vunpack.c.l.s8.bf16 %v1296
        %v1507 = vunpack.c.h.s8.bf16 %v1295
        %v1508 = vunpack.c.h.s8.bf16 %v1296
        %v1509 = vunpack.c.l.s8.bf16 %v1297
        %v1510 = vunpack.c.l.s8.bf16 %v1298
        %v1511 = vunpack.c.h.s8.bf16 %v1297
        %v1512 = vunpack.c.h.s8.bf16 %v1298
        %v1513 = vunpack.c.l.s8.bf16 %v1299
        %v1514 = vunpack.c.l.s8.bf16 %v1300
        %v1515 = vunpack.c.h.s8.bf16 %v1299
        %v1516 = vunpack.c.h.s8.bf16 %v1300
        %v1517 = vunpack.c.l.s8.bf16 %v1301
        %v1518 = vunpack.c.l.s8.bf16 %v1302
        %v1519 = vunpack.c.h.s8.bf16 %v1301
        %v1520 = vunpack.c.h.s8.bf16 %v1302
        %v1521 = vunpack.c.l.s8.bf16 %v1303
        %v1522 = vunpack.c.l.s8.bf16 %v1304
        %v1523 = vunpack.c.h.s8.bf16 %v1303
        %v1524 = vunpack.c.h.s8.bf16 %v1304
        %v1525 = vunpack.c.l.s8.bf16 %v1305
        %v1526 = vunpack.c.l.s8.bf16 %v1306
        %v1527 = vunpack.c.h.s8.bf16 %v1305
        %v1528 = vunpack.c.h.s8.bf16 %v1306
        %v1529 = vunpack.c.l.s8.bf16 %v1307
        %v1530 = vunpack.c.l.s8.bf16 %v1308
        %v1531 = vunpack.c.h.s8.bf16 %v1307
        %v1532 = vunpack.c.h.s8.bf16 %v1308
        %v1533 = vunpack.c.l.s8.bf16 %v1309
        %v1534 = vunpack.c.l.s8.bf16 %v1310
        %v1535 = vunpack.c.h.s8.bf16 %v1309
        %v1536 = vunpack.c.h.s8.bf16 %v1310
        %v1537 = vunpack.c.l.s8.bf16 %v1311
        %v1538 = vunpack.c.l.s8.bf16 %v1312
        %v1539 = vunpack.c.h.s8.bf16 %v1311
        %v1540 = vunpack.c.h.s8.bf16 %v1312
        %v1541 = vunpack.c.l.s8.bf16 %v1313
        %v1542 = vunpack.c.l.s8.bf16 %v1314
        %v1543 = vunpack.c.h.s8.bf16 %v1313
        %v1544 = vunpack.c.h.s8.bf16 %v1314
        %v1545 = vunpack.c.l.s8.bf16 %v1315
        %v1546 = vunpack.c.l.s8.bf16 %v1316
        %v1547 = vunpack.c.h.s8.bf16 %v1315
        %v1548 = vunpack.c.h.s8.bf16 %v1316
        %v1549 = vunpack.c.l.s8.bf16 %v1317
        %v1550 = vunpack.c.l.s8.bf16 %v1318
        %v1551 = vunpack.c.h.s8.bf16 %v1317
        %v1552 = vunpack.c.h.s8.bf16 %v1318
        %v1553 = vunpack.c.l.s8.bf16 %v1319
        %v1554 = vunpack.c.l.s8.bf16 %v1320
        %v1555 = vunpack.c.h.s8.bf16 %v1319
        %v1556 = vunpack.c.h.s8.bf16 %v1320
        %v1557 = vunpack.c.l.s8.bf16 %v1321
        %v1558 = vunpack.c.l.s8.bf16 %v1322
        %v1559 = vunpack.c.h.s8.bf16 %v1321
        %v1560 = vunpack.c.h.s8.bf16 %v1322
        %v1561 = vunpack.c.l.s8.bf16 %v1323
        %v1562 = vunpack.c.l.s8.bf16 %v1324
        %v1563 = vunpack.c.h.s8.bf16 %v1323
        %v1564 = vunpack.c.h.s8.bf16 %v1324
        %v1565 = vunpack.c.l.s8.bf16 %v1325
        %v1566 = vunpack.c.l.s8.bf16 %v1326
        %v1567 = vunpack.c.h.s8.bf16 %v1325
        %v1568 = vunpack.c.h.s8.bf16 %v1326
        %v1569 = vunpack.c.l.s8.bf16 %v1327
        %v1570 = vunpack.c.l.s8.bf16 %v1328
        %v1571 = vunpack.c.h.s8.bf16 %v1327
        %v1572 = vunpack.c.h.s8.bf16 %v1328
        %v1573 = vunpack.c.l.s8.bf16 %v1329
        %v1574 = vunpack.c.l.s8.bf16 %v1330
        %v1575 = vunpack.c.h.s8.bf16 %v1329
        %v1576 = vunpack.c.h.s8.bf16 %v1330
        %v1577 = vunpack.c.l.s8.bf16 %v1331
        %v1578 = vunpack.c.l.s8.bf16 %v1332
        %v1579 = vunpack.c.h.s8.bf16 %v1331
        %v1580 = vunpack.c.h.s8.bf16 %v1332
        %v1581 = vunpack.c.l.s8.bf16 %v1333
        %v1582 = vunpack.c.l.s8.bf16 %v1334
        %v1583 = vunpack.c.h.s8.bf16 %v1333
        %v1584 = vunpack.c.h.s8.bf16 %v1334
        %v1585 = vunpack.c.l.s8.bf16 %v1335
        %v1586 = vunpack.c.l.s8.bf16 %v1336
        %v1587 = vunpack.c.h.s8.bf16 %v1335
        %v1588 = vunpack.c.h.s8.bf16 %v1336
        %v1589 = vunpack.c.l.s8.bf16 %v1337
        %v1590 = vunpack.c.l.s8.bf16 %v1338
        %v1591 = vunpack.c.h.s8.bf16 %v1337
        %v1592 = vunpack.c.h.s8.bf16 %v1338
        %v1593 = vunpack.c.l.s8.bf16 %v1339
        %v1594 = vunpack.c.l.s8.bf16 %v1340
        %v1595 = vunpack.c.h.s8.bf16 %v1339
        %v1596 = vunpack.c.h.s8.bf16 %v1340
        %1597 = vmatprep.subr.bf16.mxu0 %v1356
        %1598 = vmatpush1.bf16.msra.mxu0 %v1355
        %1599 = vmatprep.subr.bf16.mxu0 %v1354
        %1600 = vmatpush1.bf16.msra.mxu0 %v1353
        %1601 = vmatprep.subr.bf16.mxu0 %v1352
        %1602 = vmatpush1.bf16.msra.mxu0 %v1351
        %1603 = vmatprep.subr.bf16.mxu0 %v1350
        %1604 = vmatpush1.bf16.msra.mxu0 %v1349
        %1605 = vmatprep.subr.bf16.mxu0 %v1348
        %1606 = vmatpush1.bf16.msra.mxu0 %v1347
        %1607 = vmatprep.subr.bf16.mxu0 %v1346
        %1608 = vmatpush1.bf16.msra.mxu0 %v1345
        %1609 = vmatprep.subr.bf16.mxu0 %v1344
        %1610 = vmatpush1.bf16.msra.mxu0 %v1343
        %1611 = vmatprep.subr.bf16.mxu0 %v1342
        %1612 = vmatpush1.bf16.msra.mxu0 %v1341
        %1613 = vmatprep.subr.bf16.mxu0 %v1372
        %1614 = vmatpush2.bf16.msra.mxu0 %v1371
        %1615 = vmatprep.subr.bf16.mxu0 %v1370
        %1616 = vmatpush2.bf16.msra.mxu0 %v1369
        %1617 = vmatprep.subr.bf16.mxu0 %v1368
        %1618 = vmatpush2.bf16.msra.mxu0 %v1367
        %1619 = vmatprep.subr.bf16.mxu0 %v1366
        %1620 = vmatpush2.bf16.msra.mxu0 %v1365
        %1621 = vmatprep.subr.bf16.mxu0 %v1364
        %1622 = vmatpush2.bf16.msra.mxu0 %v1363
        %1623 = vmatprep.subr.bf16.mxu0 %v1362
        %1624 = vmatpush2.bf16.msra.mxu0 %v1361
        %1625 = vmatprep.subr.bf16.mxu0 %v1360
        %1626 = vmatpush2.bf16.msra.mxu0 %v1359
        %1627 = vmatprep.subr.bf16.mxu0 %v1358
        %1628 = vmatpush2.bf16.msra.mxu0 %v1357
        %1629 = vmatprep.mubr.bf16.mxu0 %v1198
        %1630 = vmatmul.mubr.bf16.gmra.mxu0 %v1197
        %v1631 = vpop.f32.mrf.mxu0
        %v1632 = vadd.f32 0.0, %v1631
        %v1633 = vpop.f32.mrf.mxu0
        %v1634 = vadd.f32 0.0, %v1633
        %v1635 = vpop.f32.mrf.mxu0
        %v1636 = vpop.f32.mrf.mxu0
        %1637 = vdwg.mxu0
        %1638 = vmatprep.subr.bf16.mxu0 %v1388
        %1639 = vmatpush1.bf16.msra.mxu0 %v1387
        %1640 = vmatprep.subr.bf16.mxu0 %v1386
        %1641 = vmatpush1.bf16.msra.mxu0 %v1385
        %1642 = vmatprep.subr.bf16.mxu0 %v1384
        %1643 = vmatpush1.bf16.msra.mxu0 %v1383
        %1644 = vmatprep.subr.bf16.mxu0 %v1382
        %1645 = vmatpush1.bf16.msra.mxu0 %v1381
        %1646 = vmatprep.subr.bf16.mxu0 %v1380
        %1647 = vmatpush1.bf16.msra.mxu0 %v1379
        %1648 = vmatprep.subr.bf16.mxu0 %v1378
        %1649 = vmatpush1.bf16.msra.mxu0 %v1377
        %1650 = vmatprep.subr.bf16.mxu0 %v1376
        %1651 = vmatpush1.bf16.msra.mxu0 %v1375
        %1652 = vmatprep.subr.bf16.mxu0 %v1374
        %1653 = vmatpush1.bf16.msra.mxu0 %v1373
        %1654 = vmatprep.subr.bf16.mxu0 %v1404
        %1655 = vmatpush2.bf16.msra.mxu0 %v1403
        %1656 = vmatprep.subr.bf16.mxu0 %v1402
        %1657 = vmatpush2.bf16.msra.mxu0 %v1401
        %1658 = vmatprep.subr.bf16.mxu0 %v1400
        %1659 = vmatpush2.bf16.msra.mxu0 %v1399
        %1660 = vmatprep.subr.bf16.mxu0 %v1398
        %1661 = vmatpush2.bf16.msra.mxu0 %v1397
        %1662 = vmatprep.subr.bf16.mxu0 %v1396
        %1663 = vmatpush2.bf16.msra.mxu0 %v1395
        %1664 = vmatprep.subr.bf16.mxu0 %v1394
        %1665 = vmatpush2.bf16.msra.mxu0 %v1393
        %1666 = vmatprep.subr.bf16.mxu0 %v1392
        %1667 = vmatpush2.bf16.msra.mxu0 %v1391
        %1668 = vmatprep.subr.bf16.mxu0 %v1390
        %1669 = vmatpush2.bf16.msra.mxu0 %v1389
        %1670 = vmatprep.mubr.bf16.mxu0 %v1200
        %1671 = vmatmul.mubr.bf16.gmra.mxu0 %v1199
        %v1672 = vpop.f32.mrf.mxu0
        %v1673 = vadd.f32 %v1632, %v1672
        %v1674 = vpop.f32.mrf.mxu0
        %v1675 = vadd.f32 %v1634, %v1674
        %v1676 = vpop.f32.mrf.mxu0
        %v1677 = vpop.f32.mrf.mxu0
        %1678 = vdwg.mxu0
        %1679 = vmatprep.subr.bf16.mxu0 %v1420
        %1680 = vmatpush1.bf16.msra.mxu0 %v1419
        %1681 = vmatprep.subr.bf16.mxu0 %v1418
        %1682 = vmatpush1.bf16.msra.mxu0 %v1417
        %1683 = vmatprep.subr.bf16.mxu0 %v1416
        %1684 = vmatpush1.bf16.msra.mxu0 %v1415
        %1685 = vmatprep.subr.bf16.mxu0 %v1414
        %1686 = vmatpush1.bf16.msra.mxu0 %v1413
        %1687 = vmatprep.subr.bf16.mxu0 %v1412
        %1688 = vmatpush1.bf16.msra.mxu0 %v1411
        %1689 = vmatprep.subr.bf16.mxu0 %v1410
        %1690 = vmatpush1.bf16.msra.mxu0 %v1409
        %1691 = vmatprep.subr.bf16.mxu0 %v1408
        %1692 = vmatpush1.bf16.msra.mxu0 %v1407
        %1693 = vmatprep.subr.bf16.mxu0 %v1406
        %1694 = vmatpush1.bf16.msra.mxu0 %v1405
        %1695 = vmatprep.subr.bf16.mxu0 %v1436
        %1696 = vmatpush2.bf16.msra.mxu0 %v1435
        %1697 = vmatprep.subr.bf16.mxu0 %v1434
        %1698 = vmatpush2.bf16.msra.mxu0 %v1433
        %1699 = vmatprep.subr.bf16.mxu0 %v1432
        %1700 = vmatpush2.bf16.msra.mxu0 %v1431
        %1701 = vmatprep.subr.bf16.mxu0 %v1430
        %1702 = vmatpush2.bf16.msra.mxu0 %v1429
        %1703 = vmatprep.subr.bf16.mxu0 %v1428
        %1704 = vmatpush2.bf16.msra.mxu0 %v1427
        %1705 = vmatprep.subr.bf16.mxu0 %v1426
        %1706 = vmatpush2.bf16.msra.mxu0 %v1425
        %1707 = vmatprep.subr.bf16.mxu0 %v1424
        %1708 = vmatpush2.bf16.msra.mxu0 %v1423
        %1709 = vmatprep.subr.bf16.mxu0 %v1422
        %1710 = vmatpush2.bf16.msra.mxu0 %v1421
        %1711 = vmatprep.mubr.bf16.mxu0 %v1202
        %1712 = vmatmul.mubr.bf16.gmra.mxu0 %v1201
        %v1713 = vpop.f32.mrf.mxu0
        %v1714 = vadd.f32 %v1673, %v1713
        %v1715 = vpop.f32.mrf.mxu0
        %v1716 = vadd.f32 %v1675, %v1715
        %v1717 = vpop.f32.mrf.mxu0
        %v1718 = vpop.f32.mrf.mxu0
        %1719 = vdwg.mxu0
        %1720 = vmatprep.subr.bf16.mxu0 %v1452
        %1721 = vmatpush1.bf16.msra.mxu0 %v1451
        %1722 = vmatprep.subr.bf16.mxu0 %v1450
        %1723 = vmatpush1.bf16.msra.mxu0 %v1449
        %1724 = vmatprep.subr.bf16.mxu0 %v1448
        %1725 = vmatpush1.bf16.msra.mxu0 %v1447
        %1726 = vmatprep.subr.bf16.mxu0 %v1446
        %1727 = vmatpush1.bf16.msra.mxu0 %v1445
        %1728 = vmatprep.subr.bf16.mxu0 %v1444
        %1729 = vmatpush1.bf16.msra.mxu0 %v1443
        %1730 = vmatprep.subr.bf16.mxu0 %v1442
        %1731 = vmatpush1.bf16.msra.mxu0 %v1441
        %1732 = vmatprep.subr.bf16.mxu0 %v1440
        %1733 = vmatpush1.bf16.msra.mxu0 %v1439
        %1734 = vmatprep.subr.bf16.mxu0 %v1438
        %1735 = vmatpush1.bf16.msra.mxu0 %v1437
        %1736 = vmatprep.subr.bf16.mxu0 %v1468
        %1737 = vmatpush2.bf16.msra.mxu0 %v1467
        %1738 = vmatprep.subr.bf16.mxu0 %v1466
        %1739 = vmatpush2.bf16.msra.mxu0 %v1465
        %1740 = vmatprep.subr.bf16.mxu0 %v1464
        %1741 = vmatpush2.bf16.msra.mxu0 %v1463
        %1742 = vmatprep.subr.bf16.mxu0 %v1462
        %1743 = vmatpush2.bf16.msra.mxu0 %v1461
        %1744 = vmatprep.subr.bf16.mxu0 %v1460
        %1745 = vmatpush2.bf16.msra.mxu0 %v1459
        %1746 = vmatprep.subr.bf16.mxu0 %v1458
        %1747 = vmatpush2.bf16.msra.mxu0 %v1457
        %1748 = vmatprep.subr.bf16.mxu0 %v1456
        %1749 = vmatpush2.bf16.msra.mxu0 %v1455
        %1750 = vmatprep.subr.bf16.mxu0 %v1454
        %1751 = vmatpush2.bf16.msra.mxu0 %v1453
        %1752 = vmatprep.mubr.bf16.mxu0 %v1204
        %1753 = vmatmul.mubr.bf16.gmra.mxu0 %v1203
        %v1754 = vpop.f32.mrf.mxu0
        %v1755 = vadd.f32 %v1714, %v1754
        %v1756 = vpop.f32.mrf.mxu0
        %v1757 = vadd.f32 %v1716, %v1756
        %v1758 = vpop.f32.mrf.mxu0
        %v1759 = vpop.f32.mrf.mxu0
        %1760 = vdwg.mxu0
        %1761 = vmatprep.subr.bf16.mxu0 %v1484
        %1762 = vmatpush1.bf16.msra.mxu0 %v1483
        %1763 = vmatprep.subr.bf16.mxu0 %v1482
        %1764 = vmatpush1.bf16.msra.mxu0 %v1481
        %1765 = vmatprep.subr.bf16.mxu0 %v1480
        %1766 = vmatpush1.bf16.msra.mxu0 %v1479
        %1767 = vmatprep.subr.bf16.mxu0 %v1478
        %1768 = vmatpush1.bf16.msra.mxu0 %v1477
        %1769 = vmatprep.subr.bf16.mxu0 %v1476
        %1770 = vmatpush1.bf16.msra.mxu0 %v1475
        %1771 = vmatprep.subr.bf16.mxu0 %v1474
        %1772 = vmatpush1.bf16.msra.mxu0 %v1473
        %1773 = vmatprep.subr.bf16.mxu0 %v1472
        %1774 = vmatpush1.bf16.msra.mxu0 %v1471
        %1775 = vmatprep.subr.bf16.mxu0 %v1470
        %1776 = vmatpush1.bf16.msra.mxu0 %v1469
        %1777 = vmatprep.subr.bf16.mxu0 %v1500
        %1778 = vmatpush2.bf16.msra.mxu0 %v1499
        %1779 = vmatprep.subr.bf16.mxu0 %v1498
        %1780 = vmatpush2.bf16.msra.mxu0 %v1497
        %1781 = vmatprep.subr.bf16.mxu0 %v1496
        %1782 = vmatpush2.bf16.msra.mxu0 %v1495
        %1783 = vmatprep.subr.bf16.mxu0 %v1494
        %1784 = vmatpush2.bf16.msra.mxu0 %v1493
        %1785 = vmatprep.subr.bf16.mxu0 %v1492
        %1786 = vmatpush2.bf16.msra.mxu0 %v1491
        %1787 = vmatprep.subr.bf16.mxu0 %v1490
        %1788 = vmatpush2.bf16.msra.mxu0 %v1489
        %1789 = vmatprep.subr.bf16.mxu0 %v1488
        %1790 = vmatpush2.bf16.msra.mxu0 %v1487
        %1791 = vmatprep.subr.bf16.mxu0 %v1486
        %1792 = vmatpush2.bf16.msra.mxu0 %v1485
        %1793 = vmatprep.mubr.bf16.mxu0 %v1206
        %1794 = vmatmul.mubr.bf16.gmra.mxu0 %v1205
        %v1795 = vpop.f32.mrf.mxu0
        %v1796 = vadd.f32 %v1755, %v1795
        %v1797 = vpop.f32.mrf.mxu0
        %v1798 = vadd.f32 %v1757, %v1797
        %v1799 = vpop.f32.mrf.mxu0
        %v1800 = vpop.f32.mrf.mxu0
        %1801 = vdwg.mxu0
        %1802 = vmatprep.subr.bf16.mxu0 %v1516
        %1803 = vmatpush1.bf16.msra.mxu0 %v1515
        %1804 = vmatprep.subr.bf16.mxu0 %v1514
        %1805 = vmatpush1.bf16.msra.mxu0 %v1513
        %1806 = vmatprep.subr.bf16.mxu0 %v1512
        %1807 = vmatpush1.bf16.msra.mxu0 %v1511
        %1808 = vmatprep.subr.bf16.mxu0 %v1510
        %1809 = vmatpush1.bf16.msra.mxu0 %v1509
        %1810 = vmatprep.subr.bf16.mxu0 %v1508
        %1811 = vmatpush1.bf16.msra.mxu0 %v1507
        %1812 = vmatprep.subr.bf16.mxu0 %v1506
        %1813 = vmatpush1.bf16.msra.mxu0 %v1505
        %1814 = vmatprep.subr.bf16.mxu0 %v1504
        %1815 = vmatpush1.bf16.msra.mxu0 %v1503
        %1816 = vmatprep.subr.bf16.mxu0 %v1502
        %1817 = vmatpush1.bf16.msra.mxu0 %v1501
        %1818 = vmatprep.subr.bf16.mxu0 %v1532
        %1819 = vmatpush2.bf16.msra.mxu0 %v1531
        %1820 = vmatprep.subr.bf16.mxu0 %v1530
        %1821 = vmatpush2.bf16.msra.mxu0 %v1529
        %1822 = vmatprep.subr.bf16.mxu0 %v1528
        %1823 = vmatpush2.bf16.msra.mxu0 %v1527
        %1824 = vmatprep.subr.bf16.mxu0 %v1526
        %1825 = vmatpush2.bf16.msra.mxu0 %v1525
        %1826 = vmatprep.subr.bf16.mxu0 %v1524
        %1827 = vmatpush2.bf16.msra.mxu0 %v1523
        %1828 = vmatprep.subr.bf16.mxu0 %v1522
        %1829 = vmatpush2.bf16.msra.mxu0 %v1521
        %1830 = vmatprep.subr.bf16.mxu0 %v1520
        %1831 = vmatpush2.bf16.msra.mxu0 %v1519
        %1832 = vmatprep.subr.bf16.mxu0 %v1518
        %1833 = vmatpush2.bf16.msra.mxu0 %v1517
        %1834 = vmatprep.mubr.bf16.mxu0 %v1208
        %1835 = vmatmul.mubr.bf16.gmra.mxu0 %v1207
        %v1836 = vpop.f32.mrf.mxu0
        %v1837 = vadd.f32 %v1796, %v1836
        %v1838 = vpop.f32.mrf.mxu0
        %v1839 = vadd.f32 %v1798, %v1838
        %v1840 = vpop.f32.mrf.mxu0
        %v1841 = vpop.f32.mrf.mxu0
        %1842 = vdwg.mxu0
        %1843 = vmatprep.subr.bf16.mxu0 %v1548
        %1844 = vmatpush1.bf16.msra.mxu0 %v1547
        %1845 = vmatprep.subr.bf16.mxu0 %v1546
        %1846 = vmatpush1.bf16.msra.mxu0 %v1545
        %1847 = vmatprep.subr.bf16.mxu0 %v1544
        %1848 = vmatpush1.bf16.msra.mxu0 %v1543
        %1849 = vmatprep.subr.bf16.mxu0 %v1542
        %1850 = vmatpush1.bf16.msra.mxu0 %v1541
        %1851 = vmatprep.subr.bf16.mxu0 %v1540
        %1852 = vmatpush1.bf16.msra.mxu0 %v1539
        %1853 = vmatprep.subr.bf16.mxu0 %v1538
        %1854 = vmatpush1.bf16.msra.mxu0 %v1537
        %1855 = vmatprep.subr.bf16.mxu0 %v1536
        %1856 = vmatpush1.bf16.msra.mxu0 %v1535
        %1857 = vmatprep.subr.bf16.mxu0 %v1534
        %1858 = vmatpush1.bf16.msra.mxu0 %v1533
        %1859 = vmatprep.subr.bf16.mxu0 %v1564
        %1860 = vmatpush2.bf16.msra.mxu0 %v1563
        %1861 = vmatprep.subr.bf16.mxu0 %v1562
        %1862 = vmatpush2.bf16.msra.mxu0 %v1561
        %1863 = vmatprep.subr.bf16.mxu0 %v1560
        %1864 = vmatpush2.bf16.msra.mxu0 %v1559
        %1865 = vmatprep.subr.bf16.mxu0 %v1558
        %1866 = vmatpush2.bf16.msra.mxu0 %v1557
        %1867 = vmatprep.subr.bf16.mxu0 %v1556
        %1868 = vmatpush2.bf16.msra.mxu0 %v1555
        %1869 = vmatprep.subr.bf16.mxu0 %v1554
        %1870 = vmatpush2.bf16.msra.mxu0 %v1553
        %1871 = vmatprep.subr.bf16.mxu0 %v1552
        %1872 = vmatpush2.bf16.msra.mxu0 %v1551
        %1873 = vmatprep.subr.bf16.mxu0 %v1550
        %1874 = vmatpush2.bf16.msra.mxu0 %v1549
        %1875 = vmatprep.mubr.bf16.mxu0 %v1210
        %1876 = vmatmul.mubr.bf16.gmra.mxu0 %v1209
        %v1877 = vpop.f32.mrf.mxu0
        %v1878 = vadd.f32 %v1837, %v1877
        %v1879 = vpop.f32.mrf.mxu0
        %v1880 = vadd.f32 %v1839, %v1879
        %v1881 = vpop.f32.mrf.mxu0
        %v1882 = vpop.f32.mrf.mxu0
        %1883 = vdwg.mxu0
        %1884 = vmatprep.subr.bf16.mxu0 %v1580
        %1885 = vmatpush1.bf16.msra.mxu0 %v1579
        %1886 = vmatprep.subr.bf16.mxu0 %v1578
        %1887 = vmatpush1.bf16.msra.mxu0 %v1577
        %1888 = vmatprep.subr.bf16.mxu0 %v1576
        %1889 = vmatpush1.bf16.msra.mxu0 %v1575
        %1890 = vmatprep.subr.bf16.mxu0 %v1574
        %1891 = vmatpush1.bf16.msra.mxu0 %v1573
        %1892 = vmatprep.subr.bf16.mxu0 %v1572
        %1893 = vmatpush1.bf16.msra.mxu0 %v1571
        %1894 = vmatprep.subr.bf16.mxu0 %v1570
        %1895 = vmatpush1.bf16.msra.mxu0 %v1569
        %1896 = vmatprep.subr.bf16.mxu0 %v1568
        %1897 = vmatpush1.bf16.msra.mxu0 %v1567
        %1898 = vmatprep.subr.bf16.mxu0 %v1566
        %1899 = vmatpush1.bf16.msra.mxu0 %v1565
        %1900 = vmatprep.subr.bf16.mxu0 %v1596
        %1901 = vmatpush2.bf16.msra.mxu0 %v1595
        %1902 = vmatprep.subr.bf16.mxu0 %v1594
        %1903 = vmatpush2.bf16.msra.mxu0 %v1593
        %1904 = vmatprep.subr.bf16.mxu0 %v1592
        %1905 = vmatpush2.bf16.msra.mxu0 %v1591
        %1906 = vmatprep.subr.bf16.mxu0 %v1590
        %1907 = vmatpush2.bf16.msra.mxu0 %v1589
        %1908 = vmatprep.subr.bf16.mxu0 %v1588
        %1909 = vmatpush2.bf16.msra.mxu0 %v1587
        %1910 = vmatprep.subr.bf16.mxu0 %v1586
        %1911 = vmatpush2.bf16.msra.mxu0 %v1585
        %1912 = vmatprep.subr.bf16.mxu0 %v1584
        %1913 = vmatpush2.bf16.msra.mxu0 %v1583
        %1914 = vmatprep.subr.bf16.mxu0 %v1582
        %1915 = vmatpush2.bf16.msra.mxu0 %v1581
        %1916 = vmatprep.mubr.bf16.mxu0 %v1212
        %1917 = vmatmul.mubr.bf16.gmra.mxu0 %v1211
        %v1918 = vpop.f32.mrf.mxu0
        %v1919 = vadd.f32 %v1878, %v1918
        %v1920 = vpop.f32.mrf.mxu0
        %v1921 = vadd.f32 %v1880, %v1920
        %v1922 = vpop.f32.mrf.mxu0
        %v1923 = vpop.f32.mrf.mxu0
        %1924 = vdwg.mxu0
        %v1925 = vld [vmem:[%s471] sm:$0x3]
        %v1927 = vlaneseq
        %v1928 = vshrl.u32 %v1927, 7
        %v1929 = vsub.s32 0, %v1928
        %v1930 = vrot.slane %v1925, %v1929
        %v1931 = vlaneseq
        %v1932 = vshrl.u32 %v1931, 7
        %v1933 = vsub.s32 1, %v1932
        %v1934 = vrot.slane %v1925, %v1933
        %v1937 = vmul.f32 %v1919, %v1930
        %v1938 = vmul.f32 %v1921, %v1934
        %v1939 = vld [vmem:[%s480] sm:$0x3]
        %v1941 = vlaneseq
        %v1942 = vshrl.u32 %v1941, 7
        %v1943 = vsub.s32 0, %v1942
        %v1944 = vrot.slane %v1939, %v1943
        %v1945 = vlaneseq
        %v1946 = vshrl.u32 %v1945, 7
        %v1947 = vsub.s32 1, %v1946
        %v1948 = vrot.slane %v1939, %v1947
        %v1951 = vadd.f32 %v1937, %v1944
        %v1952 = vadd.f32 %v1938, %v1948
        %v1953 = vld [vmem:[%s489] sm:$0xff]
        %v1954 = vld [vmem:[%s489 + $0x8] sm:$0xff]
        %v1955 = vld [vmem:[%s489 + $0x10] sm:$0xff]
        %v1956 = vld [vmem:[%s489 + $0x18] sm:$0xff]
        %v1957 = vld [vmem:[%s489 + $0x20] sm:$0xff]
        %v1958 = vld [vmem:[%s489 + $0x28] sm:$0xff]
        %v1959 = vld [vmem:[%s489 + $0x30] sm:$0xff]
        %v1960 = vld [vmem:[%s489 + $0x38] sm:$0xff]
        %v1961 = vld [vmem:[%s489 + $0x40] sm:$0xff]
        %v1962 = vld [vmem:[%s489 + $0x48] sm:$0xff]
        %v1963 = vld [vmem:[%s489 + $0x50] sm:$0xff]
        %v1964 = vld [vmem:[%s489 + $0x58] sm:$0xff]
        %v1965 = vld [vmem:[%s489 + $0x60] sm:$0xff]
        %v1966 = vld [vmem:[%s489 + $0x68] sm:$0xff]
        %v1967 = vld [vmem:[%s489 + $0x70] sm:$0xff]
        %v1968 = vld [vmem:[%s489 + $0x78] sm:$0xff]
        %v1969 = vld [vmem:[%s489 + $0x80] sm:$0xff]
        %v1970 = vld [vmem:[%s489 + $0x88] sm:$0xff]
        %v1971 = vld [vmem:[%s489 + $0x90] sm:$0xff]
        %v1972 = vld [vmem:[%s489 + $0x98] sm:$0xff]
        %v1973 = vld [vmem:[%s489 + $0xa0] sm:$0xff]
        %v1974 = vld [vmem:[%s489 + $0xa8] sm:$0xff]
        %v1975 = vld [vmem:[%s489 + $0xb0] sm:$0xff]
        %v1976 = vld [vmem:[%s489 + $0xb8] sm:$0xff]
        %v1977 = vld [vmem:[%s489 + $0xc0] sm:$0xff]
        %v1978 = vld [vmem:[%s489 + $0xc8] sm:$0xff]
        %v1979 = vld [vmem:[%s489 + $0xd0] sm:$0xff]
        %v1980 = vld [vmem:[%s489 + $0xd8] sm:$0xff]
        %v1981 = vld [vmem:[%s489 + $0xe0] sm:$0xff]
        %v1982 = vld [vmem:[%s489 + $0xe8] sm:$0xff]
        %v1983 = vld [vmem:[%s489 + $0xf0] sm:$0xff]
        %v1984 = vld [vmem:[%s489 + $0xf8] sm:$0xff]
        %v1985 = vld [vmem:[%s489 + $0x100] sm:$0xff]
        %v1986 = vld [vmem:[%s489 + $0x108] sm:$0xff]
        %v1987 = vld [vmem:[%s489 + $0x110] sm:$0xff]
        %v1988 = vld [vmem:[%s489 + $0x118] sm:$0xff]
        %v1989 = vld [vmem:[%s489 + $0x120] sm:$0xff]
        %v1990 = vld [vmem:[%s489 + $0x128] sm:$0xff]
        %v1991 = vld [vmem:[%s489 + $0x130] sm:$0xff]
        %v1992 = vld [vmem:[%s489 + $0x138] sm:$0xff]
        %v1993 = vld [vmem:[%s489 + $0x140] sm:$0xff]
        %v1994 = vld [vmem:[%s489 + $0x148] sm:$0xff]
        %v1995 = vld [vmem:[%s489 + $0x150] sm:$0xff]
        %v1996 = vld [vmem:[%s489 + $0x158] sm:$0xff]
        %v1997 = vld [vmem:[%s489 + $0x160] sm:$0xff]
        %v1998 = vld [vmem:[%s489 + $0x168] sm:$0xff]
        %v1999 = vld [vmem:[%s489 + $0x170] sm:$0xff]
        %v2000 = vld [vmem:[%s489 + $0x178] sm:$0xff]
        %v2001 = vld [vmem:[%s489 + $0x180] sm:$0xff]
        %v2002 = vld [vmem:[%s489 + $0x188] sm:$0xff]
        %v2003 = vld [vmem:[%s489 + $0x190] sm:$0xff]
        %v2004 = vld [vmem:[%s489 + $0x198] sm:$0xff]
        %v2005 = vld [vmem:[%s489 + $0x1a0] sm:$0xff]
        %v2006 = vld [vmem:[%s489 + $0x1a8] sm:$0xff]
        %v2007 = vld [vmem:[%s489 + $0x1b0] sm:$0xff]
        %v2008 = vld [vmem:[%s489 + $0x1b8] sm:$0xff]
        %v2009 = vld [vmem:[%s489 + $0x1c0] sm:$0xff]
        %v2010 = vld [vmem:[%s489 + $0x1c8] sm:$0xff]
        %v2011 = vld [vmem:[%s489 + $0x1d0] sm:$0xff]
        %v2012 = vld [vmem:[%s489 + $0x1d8] sm:$0xff]
        %v2013 = vld [vmem:[%s489 + $0x1e0] sm:$0xff]
        %v2014 = vld [vmem:[%s489 + $0x1e8] sm:$0xff]
        %v2015 = vld [vmem:[%s489 + $0x1f0] sm:$0xff]
        %v2016 = vld [vmem:[%s489 + $0x1f8] sm:$0xff]
        %v2017 = vunpack.c.l.s8.bf16 %v1953
        %v2018 = vunpack.c.l.s8.bf16 %v1954
        %v2019 = vunpack.c.l.s8.bf16 %v1955
        %v2020 = vunpack.c.l.s8.bf16 %v1956
        %v2021 = vunpack.c.l.s8.bf16 %v1957
        %v2022 = vunpack.c.l.s8.bf16 %v1958
        %v2023 = vunpack.c.l.s8.bf16 %v1959
        %v2024 = vunpack.c.l.s8.bf16 %v1960
        %v2025 = vunpack.c.h.s8.bf16 %v1953
        %v2026 = vunpack.c.h.s8.bf16 %v1954
        %v2027 = vunpack.c.h.s8.bf16 %v1955
        %v2028 = vunpack.c.h.s8.bf16 %v1956
        %v2029 = vunpack.c.h.s8.bf16 %v1957
        %v2030 = vunpack.c.h.s8.bf16 %v1958
        %v2031 = vunpack.c.h.s8.bf16 %v1959
        %v2032 = vunpack.c.h.s8.bf16 %v1960
        %v2033 = vunpack.c.l.s8.bf16 %v1961
        %v2034 = vunpack.c.l.s8.bf16 %v1962
        %v2035 = vunpack.c.l.s8.bf16 %v1963
        %v2036 = vunpack.c.l.s8.bf16 %v1964
        %v2037 = vunpack.c.l.s8.bf16 %v1965
        %v2038 = vunpack.c.l.s8.bf16 %v1966
        %v2039 = vunpack.c.l.s8.bf16 %v1967
        %v2040 = vunpack.c.l.s8.bf16 %v1968
        %v2041 = vunpack.c.h.s8.bf16 %v1961
        %v2042 = vunpack.c.h.s8.bf16 %v1962
        %v2043 = vunpack.c.h.s8.bf16 %v1963
        %v2044 = vunpack.c.h.s8.bf16 %v1964
        %v2045 = vunpack.c.h.s8.bf16 %v1965
        %v2046 = vunpack.c.h.s8.bf16 %v1966
        %v2047 = vunpack.c.h.s8.bf16 %v1967
        %v2048 = vunpack.c.h.s8.bf16 %v1968
        %v2049 = vunpack.c.l.s8.bf16 %v1969
        %v2050 = vunpack.c.l.s8.bf16 %v1970
        %v2051 = vunpack.c.l.s8.bf16 %v1971
        %v2052 = vunpack.c.l.s8.bf16 %v1972
        %v2053 = vunpack.c.l.s8.bf16 %v1973
        %v2054 = vunpack.c.l.s8.bf16 %v1974
        %v2055 = vunpack.c.l.s8.bf16 %v1975
        %v2056 = vunpack.c.l.s8.bf16 %v1976
        %v2057 = vunpack.c.h.s8.bf16 %v1969
        %v2058 = vunpack.c.h.s8.bf16 %v1970
        %v2059 = vunpack.c.h.s8.bf16 %v1971
        %v2060 = vunpack.c.h.s8.bf16 %v1972
        %v2061 = vunpack.c.h.s8.bf16 %v1973
        %v2062 = vunpack.c.h.s8.bf16 %v1974
        %v2063 = vunpack.c.h.s8.bf16 %v1975
        %v2064 = vunpack.c.h.s8.bf16 %v1976
        %v2065 = vunpack.c.l.s8.bf16 %v1977
        %v2066 = vunpack.c.l.s8.bf16 %v1978
        %v2067 = vunpack.c.l.s8.bf16 %v1979
        %v2068 = vunpack.c.l.s8.bf16 %v1980
        %v2069 = vunpack.c.l.s8.bf16 %v1981
        %v2070 = vunpack.c.l.s8.bf16 %v1982
        %v2071 = vunpack.c.l.s8.bf16 %v1983
        %v2072 = vunpack.c.l.s8.bf16 %v1984
        %v2073 = vunpack.c.h.s8.bf16 %v1977
        %v2074 = vunpack.c.h.s8.bf16 %v1978
        %v2075 = vunpack.c.h.s8.bf16 %v1979
        %v2076 = vunpack.c.h.s8.bf16 %v1980
        %v2077 = vunpack.c.h.s8.bf16 %v1981
        %v2078 = vunpack.c.h.s8.bf16 %v1982
        %v2079 = vunpack.c.h.s8.bf16 %v1983
        %v2080 = vunpack.c.h.s8.bf16 %v1984
        %v2081 = vunpack.c.l.s8.bf16 %v1985
        %v2082 = vunpack.c.l.s8.bf16 %v1986
        %v2083 = vunpack.c.l.s8.bf16 %v1987
        %v2084 = vunpack.c.l.s8.bf16 %v1988
        %v2085 = vunpack.c.l.s8.bf16 %v1989
        %v2086 = vunpack.c.l.s8.bf16 %v1990
        %v2087 = vunpack.c.l.s8.bf16 %v1991
        %v2088 = vunpack.c.l.s8.bf16 %v1992
        %v2089 = vunpack.c.h.s8.bf16 %v1985
        %v2090 = vunpack.c.h.s8.bf16 %v1986
        %v2091 = vunpack.c.h.s8.bf16 %v1987
        %v2092 = vunpack.c.h.s8.bf16 %v1988
        %v2093 = vunpack.c.h.s8.bf16 %v1989
        %v2094 = vunpack.c.h.s8.bf16 %v1990
        %v2095 = vunpack.c.h.s8.bf16 %v1991
        %v2096 = vunpack.c.h.s8.bf16 %v1992
        %v2097 = vunpack.c.l.s8.bf16 %v1993
        %v2098 = vunpack.c.l.s8.bf16 %v1994
        %v2099 = vunpack.c.l.s8.bf16 %v1995
        %v2100 = vunpack.c.l.s8.bf16 %v1996
        %v2101 = vunpack.c.l.s8.bf16 %v1997
        %v2102 = vunpack.c.l.s8.bf16 %v1998
        %v2103 = vunpack.c.l.s8.bf16 %v1999
        %v2104 = vunpack.c.l.s8.bf16 %v2000
        %v2105 = vunpack.c.h.s8.bf16 %v1993
        %v2106 = vunpack.c.h.s8.bf16 %v1994
        %v2107 = vunpack.c.h.s8.bf16 %v1995
        %v2108 = vunpack.c.h.s8.bf16 %v1996
        %v2109 = vunpack.c.h.s8.bf16 %v1997
        %v2110 = vunpack.c.h.s8.bf16 %v1998
        %v2111 = vunpack.c.h.s8.bf16 %v1999
        %v2112 = vunpack.c.h.s8.bf16 %v2000
        %v2113 = vunpack.c.l.s8.bf16 %v2001
        %v2114 = vunpack.c.l.s8.bf16 %v2002
        %v2115 = vunpack.c.l.s8.bf16 %v2003
        %v2116 = vunpack.c.l.s8.bf16 %v2004
        %v2117 = vunpack.c.l.s8.bf16 %v2005
        %v2118 = vunpack.c.l.s8.bf16 %v2006
        %v2119 = vunpack.c.l.s8.bf16 %v2007
        %v2120 = vunpack.c.l.s8.bf16 %v2008
        %v2121 = vunpack.c.h.s8.bf16 %v2001
        %v2122 = vunpack.c.h.s8.bf16 %v2002
        %v2123 = vunpack.c.h.s8.bf16 %v2003
        %v2124 = vunpack.c.h.s8.bf16 %v2004
        %v2125 = vunpack.c.h.s8.bf16 %v2005
        %v2126 = vunpack.c.h.s8.bf16 %v2006
        %v2127 = vunpack.c.h.s8.bf16 %v2007
        %v2128 = vunpack.c.h.s8.bf16 %v2008
        %v2129 = vunpack.c.l.s8.bf16 %v2009
        %v2130 = vunpack.c.l.s8.bf16 %v2010
        %v2131 = vunpack.c.l.s8.bf16 %v2011
        %v2132 = vunpack.c.l.s8.bf16 %v2012
        %v2133 = vunpack.c.l.s8.bf16 %v2013
        %v2134 = vunpack.c.l.s8.bf16 %v2014
        %v2135 = vunpack.c.l.s8.bf16 %v2015
        %v2136 = vunpack.c.l.s8.bf16 %v2016
        %v2137 = vunpack.c.h.s8.bf16 %v2009
        %v2138 = vunpack.c.h.s8.bf16 %v2010
        %v2139 = vunpack.c.h.s8.bf16 %v2011
        %v2140 = vunpack.c.h.s8.bf16 %v2012
        %v2141 = vunpack.c.h.s8.bf16 %v2013
        %v2142 = vunpack.c.h.s8.bf16 %v2014
        %v2143 = vunpack.c.h.s8.bf16 %v2015
        %v2144 = vunpack.c.h.s8.bf16 %v2016
        %v2145 = vld [vmem:[#allocation18] sm:$0xff]
        %v2146 = vld [vmem:[#allocation18 + $0x8] sm:$0xff]
        %v2147 = vpack.c.bf16 %v1951, %v1951
        %v2148 = vpack.c.bf16 %v1952, %v1952
        %2149 = vmatprep.subr.bf16.mxu0 %v2074
        %2150 = vmatpush1.bf16.msra.mxu0 %v2073
        %2151 = vmatprep.subr.bf16.mxu0 %v2066
        %2152 = vmatpush1.bf16.msra.mxu0 %v2065
        %2153 = vmatprep.subr.bf16.mxu0 %v2058
        %2154 = vmatpush1.bf16.msra.mxu0 %v2057
        %2155 = vmatprep.subr.bf16.mxu0 %v2050
        %2156 = vmatpush1.bf16.msra.mxu0 %v2049
        %2157 = vmatprep.subr.bf16.mxu0 %v2042
        %2158 = vmatpush1.bf16.msra.mxu0 %v2041
        %2159 = vmatprep.subr.bf16.mxu0 %v2034
        %2160 = vmatpush1.bf16.msra.mxu0 %v2033
        %2161 = vmatprep.subr.bf16.mxu0 %v2026
        %2162 = vmatpush1.bf16.msra.mxu0 %v2025
        %2163 = vmatprep.subr.bf16.mxu0 %v2018
        %2164 = vmatpush1.bf16.msra.mxu0 %v2017
        %2165 = vmatprep.subr.bf16.mxu0 %v2138
        %2166 = vmatpush2.bf16.msra.mxu0 %v2137
        %2167 = vmatprep.subr.bf16.mxu0 %v2130
        %2168 = vmatpush2.bf16.msra.mxu0 %v2129
        %2169 = vmatprep.subr.bf16.mxu0 %v2122
        %2170 = vmatpush2.bf16.msra.mxu0 %v2121
        %2171 = vmatprep.subr.bf16.mxu0 %v2114
        %2172 = vmatpush2.bf16.msra.mxu0 %v2113
        %2173 = vmatprep.subr.bf16.mxu0 %v2106
        %2174 = vmatpush2.bf16.msra.mxu0 %v2105
        %2175 = vmatprep.subr.bf16.mxu0 %v2098
        %2176 = vmatpush2.bf16.msra.mxu0 %v2097
        %2177 = vmatprep.subr.bf16.mxu0 %v2090
        %2178 = vmatpush2.bf16.msra.mxu0 %v2089
        %2179 = vmatprep.subr.bf16.mxu0 %v2082
        %2180 = vmatpush2.bf16.msra.mxu0 %v2081
        %2181 = vmatprep.mubr.bf16.mxu0 %v2148
        %2182 = vmatmul.mubr.bf16.gmra.mxu0 %v2147
        %v2183 = vpop.f32.mrf.mxu0
        %v2184 = vadd.f32 0.0, %v2183
        %v2185 = vpop.f32.mrf.mxu0
        %v2186 = vadd.f32 0.0, %v2185
        %v2187 = vpop.f32.mrf.mxu0
        %v2188 = vpop.f32.mrf.mxu0
        %2189 = vdwg.mxu0
        %2190 = vmatprep.subr.bf16.mxu0 %v2076
        %2191 = vmatpush1.bf16.msra.mxu0 %v2075
        %2192 = vmatprep.subr.bf16.mxu0 %v2068
        %2193 = vmatpush1.bf16.msra.mxu0 %v2067
        %2194 = vmatprep.subr.bf16.mxu0 %v2060
        %2195 = vmatpush1.bf16.msra.mxu0 %v2059
        %2196 = vmatprep.subr.bf16.mxu0 %v2052
        %2197 = vmatpush1.bf16.msra.mxu0 %v2051
        %2198 = vmatprep.subr.bf16.mxu0 %v2044
        %2199 = vmatpush1.bf16.msra.mxu0 %v2043
        %2200 = vmatprep.subr.bf16.mxu0 %v2036
        %2201 = vmatpush1.bf16.msra.mxu0 %v2035
        %2202 = vmatprep.subr.bf16.mxu0 %v2028
        %2203 = vmatpush1.bf16.msra.mxu0 %v2027
        %2204 = vmatprep.subr.bf16.mxu0 %v2020
        %2205 = vmatpush1.bf16.msra.mxu0 %v2019
        %2206 = vmatprep.subr.bf16.mxu0 %v2140
        %2207 = vmatpush2.bf16.msra.mxu0 %v2139
        %2208 = vmatprep.subr.bf16.mxu0 %v2132
        %2209 = vmatpush2.bf16.msra.mxu0 %v2131
        %2210 = vmatprep.subr.bf16.mxu0 %v2124
        %2211 = vmatpush2.bf16.msra.mxu0 %v2123
        %2212 = vmatprep.subr.bf16.mxu0 %v2116
        %2213 = vmatpush2.bf16.msra.mxu0 %v2115
        %2214 = vmatprep.subr.bf16.mxu0 %v2108
        %2215 = vmatpush2.bf16.msra.mxu0 %v2107
        %2216 = vmatprep.subr.bf16.mxu0 %v2100
        %2217 = vmatpush2.bf16.msra.mxu0 %v2099
        %2218 = vmatprep.subr.bf16.mxu0 %v2092
        %2219 = vmatpush2.bf16.msra.mxu0 %v2091
        %2220 = vmatprep.subr.bf16.mxu0 %v2084
        %2221 = vmatpush2.bf16.msra.mxu0 %v2083
        %2222 = vmatprep.mubr.bf16.mxu0 %v2148
        %2223 = vmatmul.mubr.bf16.gmra.mxu0 %v2147
        %v2224 = vpop.f32.mrf.mxu0
        %v2225 = vadd.f32 0.0, %v2224
        %v2226 = vpop.f32.mrf.mxu0
        %v2227 = vadd.f32 0.0, %v2226
        %v2228 = vpop.f32.mrf.mxu0
        %v2229 = vpop.f32.mrf.mxu0
        %2230 = vdwg.mxu0
        %2231 = vmatprep.subr.bf16.mxu0 %v2078
        %2232 = vmatpush1.bf16.msra.mxu0 %v2077
        %2233 = vmatprep.subr.bf16.mxu0 %v2070
        %2234 = vmatpush1.bf16.msra.mxu0 %v2069
        %2235 = vmatprep.subr.bf16.mxu0 %v2062
        %2236 = vmatpush1.bf16.msra.mxu0 %v2061
        %2237 = vmatprep.subr.bf16.mxu0 %v2054
        %2238 = vmatpush1.bf16.msra.mxu0 %v2053
        %2239 = vmatprep.subr.bf16.mxu0 %v2046
        %2240 = vmatpush1.bf16.msra.mxu0 %v2045
        %2241 = vmatprep.subr.bf16.mxu0 %v2038
        %2242 = vmatpush1.bf16.msra.mxu0 %v2037
        %2243 = vmatprep.subr.bf16.mxu0 %v2030
        %2244 = vmatpush1.bf16.msra.mxu0 %v2029
        %2245 = vmatprep.subr.bf16.mxu0 %v2022
        %2246 = vmatpush1.bf16.msra.mxu0 %v2021
        %2247 = vmatprep.subr.bf16.mxu0 %v2142
        %2248 = vmatpush2.bf16.msra.mxu0 %v2141
        %2249 = vmatprep.subr.bf16.mxu0 %v2134
        %2250 = vmatpush2.bf16.msra.mxu0 %v2133
        %2251 = vmatprep.subr.bf16.mxu0 %v2126
        %2252 = vmatpush2.bf16.msra.mxu0 %v2125
        %2253 = vmatprep.subr.bf16.mxu0 %v2118
        %2254 = vmatpush2.bf16.msra.mxu0 %v2117
        %2255 = vmatprep.subr.bf16.mxu0 %v2110
        %2256 = vmatpush2.bf16.msra.mxu0 %v2109
        %2257 = vmatprep.subr.bf16.mxu0 %v2102
        %2258 = vmatpush2.bf16.msra.mxu0 %v2101
        %2259 = vmatprep.subr.bf16.mxu0 %v2094
        %2260 = vmatpush2.bf16.msra.mxu0 %v2093
        %2261 = vmatprep.subr.bf16.mxu0 %v2086
        %2262 = vmatpush2.bf16.msra.mxu0 %v2085
        %2263 = vmatprep.mubr.bf16.mxu0 %v2148
        %2264 = vmatmul.mubr.bf16.gmra.mxu0 %v2147
        %v2265 = vpop.f32.mrf.mxu0
        %v2266 = vadd.f32 0.0, %v2265
        %v2267 = vpop.f32.mrf.mxu0
        %v2268 = vadd.f32 0.0, %v2267
        %v2269 = vpop.f32.mrf.mxu0
        %v2270 = vpop.f32.mrf.mxu0
        %2271 = vdwg.mxu0
        %2272 = vmatprep.subr.bf16.mxu0 %v2080
        %2273 = vmatpush1.bf16.msra.mxu0 %v2079
        %2274 = vmatprep.subr.bf16.mxu0 %v2072
        %2275 = vmatpush1.bf16.msra.mxu0 %v2071
        %2276 = vmatprep.subr.bf16.mxu0 %v2064
        %2277 = vmatpush1.bf16.msra.mxu0 %v2063
        %2278 = vmatprep.subr.bf16.mxu0 %v2056
        %2279 = vmatpush1.bf16.msra.mxu0 %v2055
        %2280 = vmatprep.subr.bf16.mxu0 %v2048
        %2281 = vmatpush1.bf16.msra.mxu0 %v2047
        %2282 = vmatprep.subr.bf16.mxu0 %v2040
        %2283 = vmatpush1.bf16.msra.mxu0 %v2039
        %2284 = vmatprep.subr.bf16.mxu0 %v2032
        %2285 = vmatpush1.bf16.msra.mxu0 %v2031
        %2286 = vmatprep.subr.bf16.mxu0 %v2024
        %2287 = vmatpush1.bf16.msra.mxu0 %v2023
        %2288 = vmatprep.subr.bf16.mxu0 %v2144
        %2289 = vmatpush2.bf16.msra.mxu0 %v2143
        %2290 = vmatprep.subr.bf16.mxu0 %v2136
        %2291 = vmatpush2.bf16.msra.mxu0 %v2135
        %2292 = vmatprep.subr.bf16.mxu0 %v2128
        %2293 = vmatpush2.bf16.msra.mxu0 %v2127
        %2294 = vmatprep.subr.bf16.mxu0 %v2120
        %2295 = vmatpush2.bf16.msra.mxu0 %v2119
        %2296 = vmatprep.subr.bf16.mxu0 %v2112
        %2297 = vmatpush2.bf16.msra.mxu0 %v2111
        %2298 = vmatprep.subr.bf16.mxu0 %v2104
        %2299 = vmatpush2.bf16.msra.mxu0 %v2103
        %2300 = vmatprep.subr.bf16.mxu0 %v2096
        %2301 = vmatpush2.bf16.msra.mxu0 %v2095
        %2302 = vmatprep.subr.bf16.mxu0 %v2088
        %2303 = vmatpush2.bf16.msra.mxu0 %v2087
        %2304 = vmatprep.mubr.bf16.mxu0 %v2148
        %2305 = vmatmul.mubr.bf16.gmra.mxu0 %v2147
        %v2306 = vpop.f32.mrf.mxu0
        %v2307 = vadd.f32 0.0, %v2306
        %v2308 = vpop.f32.mrf.mxu0
        %v2309 = vadd.f32 0.0, %v2308
        %v2310 = vpop.f32.mrf.mxu0
        %v2311 = vpop.f32.mrf.mxu0
        %2312 = vdwg.mxu0
        %v2321 = vcombine.low %v2184, %v2186
        %v2322 = vcombine.low %v2225, %v2227
        %v2324 = vunpack.c.l.s4 1983009808
        %v2325 = vunpack.c.0.s8 %v2324
        %v2326 = vlaneseq
        %v2327 = vshrl.u32 %v2326, 7
        %v2328 = vsub.s32 %v2325, %v2327
        %v2329 = vrot.slane %v2321, %v2328
        %v2331 = vunpack.c.l.s4 1983009808
        %v2332 = vunpack.c.0.s8 %v2331
        %v2333 = vlaneseq
        %v2334 = vshrl.u32 %v2333, 7
        %v2335 = vsub.s32 %v2332, %v2334
        %v2336 = vrot.slane %v2322, %v2335
        %v2337 = vcombine.low %v2329, %v2336
        %v2338 = vcombine.low %v2266, %v2268
        %v2339 = vcombine.low %v2307, %v2309
        %v2341 = vunpack.c.l.s4 1983009808
        %v2342 = vunpack.c.0.s8 %v2341
        %v2343 = vlaneseq
        %v2344 = vshrl.u32 %v2343, 7
        %v2345 = vsub.s32 %v2342, %v2344
        %v2346 = vrot.slane %v2338, %v2345
        %v2348 = vunpack.c.l.s4 1983009808
        %v2349 = vunpack.c.0.s8 %v2348
        %v2350 = vlaneseq
        %v2351 = vshrl.u32 %v2350, 7
        %v2352 = vsub.s32 %v2349, %v2351
        %v2353 = vrot.slane %v2339, %v2352
        %v2354 = vcombine.low %v2346, %v2353
        %v2357 = vadd.f32 %v2145, %v2337
        %v2358 = vadd.f32 %v2146, %v2354
        %2359 = vst [vmem:[#allocation18] sm:$0xff] %v2357
        %2360 = vst [vmem:[#allocation18 + $0x8] sm:$0xff] %v2358
        %p2361 = scmp.eq.s32.totalorder %s31, 3
        // Predicated region
        $region101: #{tpu_custom_call.1} parent=59 // pred_check
          %p2362 = pneg %p2361
        $region102: #{tpu_custom_call.1} parent=59 // pred_check_branch
          %2364 = sbr.rel (%p2362) target = $region104
        $region103: #{tpu_custom_call.1} parent=59 // pred_region
          %v2365 = vld [vmem:[#allocation18] sm:$0xff]
          %v2366 = vld [vmem:[#allocation18 + $0x8] sm:$0xff]
          %v2367 = vld [vmem:[#allocation15] sm:$0xff]
          %v2369 = vlaneseq
          %v2370 = vshrl.u32 %v2369, 7
          %v2371 = vsub.s32 0, %v2370
          %v2372 = vrot.slane %v2367, %v2371
          %v2373 = vlaneseq
          %v2374 = vshrl.u32 %v2373, 7
          %v2375 = vsub.s32 1, %v2374
          %v2376 = vrot.slane %v2367, %v2375
          %v2377 = vlaneseq
          %v2378 = vshrl.u32 %v2377, 7
          %v2379 = vsub.s32 2, %v2378
          %v2380 = vrot.slane %v2367, %v2379
          %v2381 = vlaneseq
          %v2382 = vshrl.u32 %v2381, 7
          %v2383 = vsub.s32 3, %v2382
          %v2384 = vrot.slane %v2367, %v2383
          %v2385 = vlaneseq
          %v2386 = vshrl.u32 %v2385, 7
          %v2387 = vsub.s32 4, %v2386
          %v2388 = vrot.slane %v2367, %v2387
          %v2389 = vlaneseq
          %v2390 = vshrl.u32 %v2389, 7
          %v2391 = vsub.s32 5, %v2390
          %v2392 = vrot.slane %v2367, %v2391
          %v2393 = vlaneseq
          %v2394 = vshrl.u32 %v2393, 7
          %v2395 = vsub.s32 6, %v2394
          %v2396 = vrot.slane %v2367, %v2395
          %v2397 = vlaneseq
          %v2398 = vshrl.u32 %v2397, 7
          %v2399 = vsub.s32 7, %v2398
          %v2400 = vrot.slane %v2367, %v2399
          %v2401 = vcombine.low %v2372, %v2376
          %v2402 = vcombine.low %v2380, %v2384
          %v2404 = vunpack.c.l.s4 1983009808
          %v2405 = vunpack.c.0.s8 %v2404
          %v2406 = vlaneseq
          %v2407 = vshrl.u32 %v2406, 7
          %v2408 = vsub.s32 %v2405, %v2407
          %v2409 = vrot.slane %v2401, %v2408
          %v2411 = vunpack.c.l.s4 1983009808
          %v2412 = vunpack.c.0.s8 %v2411
          %v2413 = vlaneseq
          %v2414 = vshrl.u32 %v2413, 7
          %v2415 = vsub.s32 %v2412, %v2414
          %v2416 = vrot.slane %v2402, %v2415
          %v2417 = vcombine.low %v2409, %v2416
          %v2418 = vcombine.low %v2388, %v2392
          %v2419 = vcombine.low %v2396, %v2400
          %v2421 = vunpack.c.l.s4 1983009808
          %v2422 = vunpack.c.0.s8 %v2421
          %v2423 = vlaneseq
          %v2424 = vshrl.u32 %v2423, 7
          %v2425 = vsub.s32 %v2422, %v2424
          %v2426 = vrot.slane %v2418, %v2425
          %v2428 = vunpack.c.l.s4 1983009808
          %v2429 = vunpack.c.0.s8 %v2428
          %v2430 = vlaneseq
          %v2431 = vshrl.u32 %v2430, 7
          %v2432 = vsub.s32 %v2429, %v2431
          %v2433 = vrot.slane %v2419, %v2432
          %v2434 = vcombine.low %v2426, %v2433
          %v2437 = vmul.f32 %v2365, %v2417
          %v2438 = vmul.f32 %v2366, %v2434
          %v2439 = vld [vmem:[#allocation17] sm:$0xff]
          %v2441 = vlaneseq
          %v2442 = vshrl.u32 %v2441, 7
          %v2443 = vsub.s32 0, %v2442
          %v2444 = vrot.slane %v2439, %v2443
          %v2445 = vlaneseq
          %v2446 = vshrl.u32 %v2445, 7
          %v2447 = vsub.s32 1, %v2446
          %v2448 = vrot.slane %v2439, %v2447
          %v2449 = vlaneseq
          %v2450 = vshrl.u32 %v2449, 7
          %v2451 = vsub.s32 2, %v2450
          %v2452 = vrot.slane %v2439, %v2451
          %v2453 = vlaneseq
          %v2454 = vshrl.u32 %v2453, 7
          %v2455 = vsub.s32 3, %v2454
          %v2456 = vrot.slane %v2439, %v2455
          %v2457 = vlaneseq
          %v2458 = vshrl.u32 %v2457, 7
          %v2459 = vsub.s32 4, %v2458
          %v2460 = vrot.slane %v2439, %v2459
          %v2461 = vlaneseq
          %v2462 = vshrl.u32 %v2461, 7
          %v2463 = vsub.s32 5, %v2462
          %v2464 = vrot.slane %v2439, %v2463
          %v2465 = vlaneseq
          %v2466 = vshrl.u32 %v2465, 7
          %v2467 = vsub.s32 6, %v2466
          %v2468 = vrot.slane %v2439, %v2467
          %v2469 = vlaneseq
          %v2470 = vshrl.u32 %v2469, 7
          %v2471 = vsub.s32 7, %v2470
          %v2472 = vrot.slane %v2439, %v2471
          %v2473 = vcombine.low %v2444, %v2448
          %v2474 = vcombine.low %v2452, %v2456
          %v2476 = vunpack.c.l.s4 1983009808
          %v2477 = vunpack.c.0.s8 %v2476
          %v2478 = vlaneseq
          %v2479 = vshrl.u32 %v2478, 7
          %v2480 = vsub.s32 %v2477, %v2479
          %v2481 = vrot.slane %v2473, %v2480
          %v2483 = vunpack.c.l.s4 1983009808
          %v2484 = vunpack.c.0.s8 %v2483
          %v2485 = vlaneseq
          %v2486 = vshrl.u32 %v2485, 7
          %v2487 = vsub.s32 %v2484, %v2486
          %v2488 = vrot.slane %v2474, %v2487
          %v2489 = vcombine.low %v2481, %v2488
          %v2490 = vcombine.low %v2460, %v2464
          %v2491 = vcombine.low %v2468, %v2472
          %v2493 = vunpack.c.l.s4 1983009808
          %v2494 = vunpack.c.0.s8 %v2493
          %v2495 = vlaneseq
          %v2496 = vshrl.u32 %v2495, 7
          %v2497 = vsub.s32 %v2494, %v2496
          %v2498 = vrot.slane %v2490, %v2497
          %v2500 = vunpack.c.l.s4 1983009808
          %v2501 = vunpack.c.0.s8 %v2500
          %v2502 = vlaneseq
          %v2503 = vshrl.u32 %v2502, 7
          %v2504 = vsub.s32 %v2501, %v2503
          %v2505 = vrot.slane %v2491, %v2504
          %v2506 = vcombine.low %v2498, %v2505
          %v2509 = vadd.f32 %v2437, %v2489
          %v2510 = vadd.f32 %v2438, %v2506
          %2511 = vst [vmem:[#allocation18] sm:$0xff] %v2509
          %2512 = vst [vmem:[#allocation18 + $0x8] sm:$0xff] %v2510
        $region104: #{tpu_custom_call.1} parent=59 // pred_fallthru
          _
        // Predicated region
        $region105: #{tpu_custom_call.1} parent=59 // pred_check
          %p2513 = pneg %p274
        $region106: #{tpu_custom_call.1} parent=59 // pred_check_branch
          %2515 = sbr.rel (%p2513) target = $region108
        $region107: #{tpu_custom_call.1} parent=59 // pred_region
          %s2517 = ssub.s32 256, 256
          %2518 = vsyncadd [#allocation5], %s2517
          %s2520 = sshll.u32 [#allocation18], 4
          %s2521 = int_to_ptr.vmem [resolvable:$true] %s2520
          %2523 = dma.vmem_to_hbm [thread:$0]  %s2521, 256, %s10, [#allocation5]
        $region108: #{tpu_custom_call.1} parent=59 // pred_fallthru
          _
        // Predicated region
        $region109: #{tpu_custom_call.1} parent=59 // pred_check
          %p2524 = pneg %p274
        $region110: #{tpu_custom_call.1} parent=59 // pred_check_branch
          %2526 = sbr.rel (%p2524) target = $region112
        $region111: #{tpu_custom_call.1} parent=59 // pred_region
          %2527 = dma.done [#allocation5], 256
        $region112: #{tpu_custom_call.1} parent=59 // pred_fallthru
          _
      $region60: #{tpu_custom_call.1} parent=5 // pred_fallthru
        _
      %p2528 = scmp.le.s32.totalorder 2, %s26
      // Predicated region
      $region113: #{tpu_custom_call.1} parent=5 // pred_check
        %p2529 = pneg %p2528
      $region114: #{tpu_custom_call.1} parent=5 // pred_check_branch
        %2531 = sbr.rel (%p2529) target = $region116
      $region115: #{tpu_custom_call.1} parent=5 // pred_region
        %s2532 = ssub.s32 %s26, 2
      $region116: #{tpu_custom_call.1} parent=5 // pred_fallthru
        _
    $region6: #{tpu_custom_call.1} parent=1 // loop_footer
      %s30 = sadd.s32 1, %s26
    $region7: #{tpu_custom_call.1} parent=1 // loop_footer_branch
      %25 = sbr.rel target = $region3
    $region8: #{tpu_custom_call.1} parent=1 // loop_exit
      _
    %2533 = vsyncpa [#allocation4], 1
    %s2534 = scalar_lea.sflag [#allocation4], 1
    %2535 = vsyncpa %s2534, 1
    %2536 = vsyncpa [#allocation7], 1
    %2537 = vsyncpa [#allocation10], 1
    %s2538 = scalar_lea.sflag [#allocation10], 1
    %2539 = vsyncpa %s2538, 1
    %2540 = vsyncpa [#allocation13], 1
    %s2541 = scalar_lea.sflag [#allocation13], 1
    %2542 = vsyncpa %s2541, 1
    %2543 = vsyncpa [#allocation16], 1
    %2544 = vsyncpa [#allocation5], 1
    %s2545 = scalar_lea.sflag [#allocation5], 1
    %2546 = vsyncpa %s2545, 1

</llo_original>
